<compile_context>
chip_gen: v7x
topology: tpu7x:2x2x1
jax: 0.10.0
libtpu: 0.0.40
codegen_flags: <defaults>
</compile_context>

<pallas_src>
import functools

import jax
import jax.numpy as jnp
import numpy as np
from jax import lax
from jax.experimental import pallas as pl
from jax.experimental.pallas import tpu as pltpu


_CONTRACT_LAST = (((1,), (1,)), ((), ()))   # contract last dim of A with last dim of B
_MIB = 1024 * 1024


# ---------------------------------------------------------------------------
# helpers
# ---------------------------------------------------------------------------
def _device_kind():
    try:
        return jax.devices()[0].device_kind.lower()
    except Exception:
        return ""


def _pick_tile(dim, candidates):
    """Largest candidate tile that evenly divides `dim`, else the full dim."""
    for c in candidates:
        if c <= dim and dim % c == 0:
            return c
    return dim


def _heads_per_block(heads, dim_head):
    """Smallest head group whose fused lane width is a multiple of 128."""
    for g in range(1, heads + 1):
        if heads % g == 0 and (g * dim_head) % 128 == 0:
            return g
    return heads


def _clamp_vmem(nbytes):
    # Computed-from-tiles request (+8 MiB margin), clamped to [32, 48] MiB so
    # we never starve v7x (64 MiB/TC) of compiler-internal scratch.
    return int(min(max(nbytes + 8 * _MIB, 32 * _MIB), 48 * _MIB))


def _proj_plan(m, d_in, d_out, n_out, x_b, w_b, o_b):
    """Tile sizes, grid, VMEM limit and HBM-byte estimate for a projection."""
    tm = _pick_tile(m, (512, 256, 128, 64, 32, 16, 8))
    tn = _pick_tile(d_out, (1024, 512, 256, 128))
    # Full-K block when it fits (weights then stay VMEM-resident across all
    # row tiles -> loaded once); otherwise K-tile to cap VMEM.
    tk = d_in if d_in <= 2048 else _pick_tile(d_in, (2048, 1024, 512, 256))
    n_j, n_i, n_k = d_out // tn, m // tm, d_in // tk

    vmem = (2 * (tm * tk * x_b                    # x tile, double-buffered
                 + n_out * tn * tk * w_b          # weight tiles
                 + n_out * max(tn, 128) * 4       # bias rows (lane-padded)
                 + n_out * tm * tn * o_b)         # output tiles
            + n_out * tm * tn * 4)                # f32 accumulators
    w_refetch = 1 if n_k == 1 else n_i            # weight HBM re-fetch factor
    hbm = (n_j * m * d_in * x_b
           + w_refetch * n_out * d_out * d_in * w_b
           + n_out * d_out * 4
           + n_out * m * d_out * o_b)
    return tm, tn, tk, (n_j, n_i, n_k), _clamp_vmem(vmem), int(hbm)


# ---------------------------------------------------------------------------
# Kernel 1: fused Q/K/V projection with a K (d_in) reduction axis.
#           y_i = x @ W_i^T + b_i  (dot_general, no in-kernel transpose).
# ---------------------------------------------------------------------------
def _qkv_kernel(x_ref, wq_ref, wk_ref, wv_ref, bq_ref, bk_ref, bv_ref,
                q_ref, k_ref, v_ref, accq, acck, accv, *, compute_dtype):
    kk = pl.program_id(2)

    @pl.when(kk == 0)
    def _init():
        accq[...] = jnp.zeros_like(accq)
        acck[...] = jnp.zeros_like(acck)
        accv[...] = jnp.zeros_like(accv)

    x = x_ref[...].astype(compute_dtype)                       # bf16 MXU path
    accq[...] += lax.dot_general(x, wq_ref[...].astype(compute_dtype),
                                 _CONTRACT_LAST, preferred_element_type=jnp.float32)
    acck[...] += lax.dot_general(x, wk_ref[...].astype(compute_dtype),
                                 _CONTRACT_LAST, preferred_element_type=jnp.float32)
    accv[...] += lax.dot_general(x, wv_ref[...].astype(compute_dtype),
                                 _CONTRACT_LAST, preferred_element_type=jnp.float32)

    @pl.when(kk == pl.num_programs(2) - 1)
    def _fin():
        q_ref[...] = (accq[...] + bq_ref[...]).astype(q_ref.dtype)
        k_ref[...] = (acck[...] + bk_ref[...]).astype(k_ref.dtype)
        v_ref[...] = (accv[...] + bv_ref[...]).astype(v_ref.dtype)


def fused_qkv_projection(x2d, wq, bq, wk, bk, wv, bv, *, out_dtype, compute_dtype):
    """x2d: (M, d_in); w*: (d_out, d_in) in compute dtype; b*: (d_out,) f32."""
    m, d_in = x2d.shape
    d_out = wq.shape[0]
    x_b = x2d.dtype.itemsize
    w_b = wq.dtype.itemsize
    o_b = np.dtype(out_dtype).itemsize
    tm, tn, tk, grid, vmem_limit, hbm = _proj_plan(m, d_in, d_out, 3, x_b, w_b, o_b)

    x_spec = pl.BlockSpec((tm, tk), lambda j, i, k: (i, k))
    w_spec = pl.BlockSpec((tn, tk), lambda j, i, k: (j, k))   # indep. of i -> resident when n_k==1
    b_spec = pl.BlockSpec((1, tn), lambda j, i, k: (0, j))
    o_spec = pl.BlockSpec((tm, tn), lambda j, i, k: (i, j))
    out_sds = jax.ShapeDtypeStruct((m, d_out), out_dtype)

    cost = pl.CostEstimate(flops=3 * 2 * m * d_in * d_out,
                           transcendentals=0, bytes_accessed=hbm)
    return pl.pallas_call(
        functools.partial(_qkv_kernel, compute_dtype=compute_dtype),
        out_shape=(out_sds, out_sds, out_sds),
        grid_spec=pltpu.PrefetchScalarGridSpec(
            num_scalar_prefetch=0,
            grid=grid,                                  # (j, i, k), k innermost
            in_specs=[x_spec, w_spec, w_spec, w_spec, b_spec, b_spec, b_spec],
            out_specs=(o_spec, o_spec, o_spec),
            scratch_shapes=[pltpu.VMEM((tm, tn), jnp.float32) for _ in range(3)],
        ),
        compiler_params=pltpu.CompilerParams(
            dimension_semantics=("parallel", "parallel", "arbitrary"),
            vmem_limit_bytes=vmem_limit),
        cost_estimate=cost,
    )(x2d, wq, wk, wv,
      bq.reshape(1, d_out), bk.reshape(1, d_out), bv.reshape(1, d_out))


# ---------------------------------------------------------------------------
# Kernel 2: tiled linear (output projection), same structure with one output.
# ---------------------------------------------------------------------------
def _linear_kernel(x_ref, w_ref, b_ref, o_ref, acc_ref, *, compute_dtype):
    kk = pl.program_id(2)

    @pl.when(kk == 0)
    def _init():
        acc_ref[...] = jnp.zeros_like(acc_ref)

    acc_ref[...] += lax.dot_general(
        x_ref[...].astype(compute_dtype), w_ref[...].astype(compute_dtype),
        _CONTRACT_LAST, preferred_element_type=jnp.float32)

    @pl.when(kk == pl.num_programs(2) - 1)
    def _fin():
        o_ref[...] = (acc_ref[...] + b_ref[...]).astype(o_ref.dtype)


def linear(x2d, w, b, *, out_dtype, compute_dtype):
    m, d_in = x2d.shape
    d_out = w.shape[0]
    x_b = x2d.dtype.itemsize
    w_b = w.dtype.itemsize
    o_b = np.dtype(out_dtype).itemsize
    tm, tn, tk, grid, vmem_limit, hbm = _proj_plan(m, d_in, d_out, 1, x_b, w_b, o_b)

    cost = pl.CostEstimate(flops=2 * m * d_in * d_out,
                           transcendentals=0, bytes_accessed=hbm)
    return pl.pallas_call(
        functools.partial(_linear_kernel, compute_dtype=compute_dtype),
        out_shape=jax.ShapeDtypeStruct((m, d_out), out_dtype),
        grid_spec=pltpu.PrefetchScalarGridSpec(
            num_scalar_prefetch=0,
            grid=grid,
            in_specs=[pl.BlockSpec((tm, tk), lambda j, i, k: (i, k)),
                      pl.BlockSpec((tn, tk), lambda j, i, k: (j, k)),
                      pl.BlockSpec((1, tn), lambda j, i, k: (0, j))],
            out_specs=pl.BlockSpec((tm, tn), lambda j, i, k: (i, j)),
            scratch_shapes=[pltpu.VMEM((tm, tn), jnp.float32)],
        ),
        compiler_params=pltpu.CompilerParams(
            dimension_semantics=("parallel", "parallel", "arbitrary"),
            vmem_limit_bytes=vmem_limit),
        cost_estimate=cost,
    )(x2d, w, b.reshape(1, d_out))


# ---------------------------------------------------------------------------
# Kernel 3: flash-style multi-head attention on the fused (B, N, H*DH) layout.
# Grid: (batch, head-group, q-tile, kv-tile); heads are grouped so each block
# has >=128 lanes, the head split/merge is pure BlockSpec lane indexing (no
# HBM transposes).  Online softmax keeps m/l/acc in f32 VMEM scratch.
# ---------------------------------------------------------------------------
def _mha_flash_kernel(q_ref, k_ref, v_ref, o_ref, m_sc, l_sc, acc_sc,
                      *, heads_per_blk, dim_head, compute_dtype, exp_dtype):
    kv_i = pl.program_id(3)

    @pl.when(kv_i == 0)
    def _init():
        m_sc[...] = jnp.full_like(m_sc, -jnp.inf)
        l_sc[...] = jnp.zeros_like(l_sc)
        acc_sc[...] = jnp.zeros_like(acc_sc)

    # 1/sqrt(dh) is already folded into W_q / b_q -> no per-step scale multiply.
    q_all = q_ref[...]                                      # (tq, hpb*dh) compute dtype
    k_all = k_ref[...]
    v_all = v_ref[...]

    # NOTE: dh=64 head slices split a 128-lane vreg; hpb is chosen so each
    # block stays lane-dense (>=128) and the slicing stays a static half-vreg
    # select per head (audited as acceptable filler under the EUP-bound loop).
    for h in range(heads_per_blk):                          # static, unrolled
        lo = h * dim_head
        qh = q_all[:, lo:lo + dim_head]                     # (tq, dh)
        kh = k_all[:, lo:lo + dim_head]                     # (tk, dh)
        vh = v_all[:, lo:lo + dim_head]                     # (tk, dh)

        # q @ k^T without materializing a transpose (contract the dh axes).
        s = lax.dot_general(qh, kh, _CONTRACT_LAST,
                            preferred_element_type=jnp.float32)   # (tq, tk) f32

        m_prev = m_sc[h]                                    # (tq, 1) f32
        l_prev = l_sc[h]
        acc_prev = acc_sc[h]                                # (tq, dh) f32

        m_new = jnp.maximum(m_prev, jnp.max(s, axis=-1, keepdims=True))
        alpha = jnp.exp(m_prev - m_new)                     # (tq, 1) f32 (tiny)
        # exp on bf16 inputs on v6e/v7x (EUP is the binding unit); f32 on v5e.
        p = jnp.exp((s - m_new).astype(exp_dtype))          # (tq, tk)
        l_sc[h] = alpha * l_prev + jnp.sum(p.astype(jnp.float32),
                                           axis=-1, keepdims=True)
        acc_sc[h] = alpha * acc_prev + jnp.dot(
            p.astype(compute_dtype), vh, preferred_element_type=jnp.float32)
        m_sc[h] = m_new

    # Dropout on the attention probabilities is identity in inference mode.
    # TODO(synk): training-mode dropout (stateful PRNG mask on p) not implemented.
    @pl.when(kv_i == pl.num_programs(3) - 1)
    def _finalize():
        outs = []
        for h in range(heads_per_blk):
            inv_l = pl.reciprocal(l_sc[h], approx=True)     # EUP vrcp, ~free
            outs.append(acc_sc[h] * inv_l)
        # Single lane-dense write of the whole (tq, hpb*dh) output tile.
        o_ref[...] = jnp.concatenate(outs, axis=-1).astype(o_ref.dtype)


def attention(q, k, v, *, heads, dim_head, compute_dtype):
    """q, k, v: (B, N, H*DH) fused layout (q pre-scaled) -> out (B, N, H*DH)."""
    b, n, inner = q.shape
    assert inner == heads * dim_head

    hpb = _heads_per_block(heads, dim_head)   # heads per block (lane-dense)
    gs = hpb * dim_head                       # lane width of each block
    n_groups = heads // hpb

    kind = _device_kind()
    if "v5" in kind:                          # low HBM BW: keep tq large
        tq_c, tk_c = (1024, 512, 256, 128), (1024, 512, 256, 128)
    elif "v6" in kind:                        # smaller score temporaries
        tq_c, tk_c = (512, 256, 128), (1024, 512, 256, 128)
    else:                                     # v7x / unknown: 64 MiB VMEM per TC
        tq_c, tk_c = (512, 256, 128), (512, 256, 128)
    tq = _pick_tile(n, tq_c)
    tk = _pick_tile(n, tk_c)

    bf16_compute = np.dtype(compute_dtype) == np.dtype(jnp.bfloat16)
    old_gen = any(g in kind for g in ("v2", "v3", "v4", "v5"))
    exp_dtype = jnp.bfloat16 if (bf16_compute and not old_gen) else jnp.float32

    cb = np.dtype(compute_dtype).itemsize
    eb = np.dtype(exp_dtype).itemsize
    vmem_est = (2 * (2 * tq + 2 * tk) * gs * cb                       # q,k,v,o (x2 buf)
                + hpb * tq * (2 * 128 + max(dim_head, 128)) * 4       # m,l,acc scratch
                + 2 * tq * tk * (4 + eb))                             # s/p temporaries

    q_spec = pl.BlockSpec((None, tq, gs), lambda bi, gi, qi, ki: (bi, qi, gi))
    kv_spec = pl.BlockSpec((None, tk, gs), lambda bi, gi, qi, ki: (bi, ki, gi))
    o_spec = pl.BlockSpec((None, tq, gs), lambda bi, gi, qi, ki: (bi, qi, gi))

    kern = functools.partial(_mha_flash_kernel, heads_per_blk=hpb,
                             dim_head=dim_head, compute_dtype=compute_dtype,
                             exp_dtype=exp_dtype)
    # HBM traffic includes KV re-streaming: K and V are re-read n/tq times.
    hbm = (b * n * inner * cb                        # q, read once
           + 2 * (n // tq) * b * n * inner * cb      # k and v, re-streamed
           + b * n * inner * cb)                     # out
    cost = pl.CostEstimate(flops=4 * b * heads * n * n * dim_head,
                           transcendentals=b * heads * n * n,
                           bytes_accessed=int(hbm))

    return pl.pallas_call(
        kern,
        out_shape=jax.ShapeDtypeStruct((b, n, inner), compute_dtype),
        grid_spec=pltpu.PrefetchScalarGridSpec(
            num_scalar_prefetch=0,
            grid=(b, n_groups, n // tq, n // tk),
            in_specs=[q_spec, kv_spec, kv_spec],
            out_specs=o_spec,
            scratch_shapes=[pltpu.VMEM((hpb, tq, 1), jnp.float32),          # m
                            pltpu.VMEM((hpb, tq, 1), jnp.float32),          # l
                            pltpu.VMEM((hpb, tq, dim_head), jnp.float32)],  # acc
        ),
        compiler_params=pltpu.CompilerParams(
            dimension_semantics=("parallel", "parallel", "parallel", "arbitrary"),
            vmem_limit_bytes=_clamp_vmem(vmem_est)),
        cost_estimate=cost,
    )(q, k, v)


# ---------------------------------------------------------------------------
# Module wrapper
# ---------------------------------------------------------------------------
def self_attention_forward(x, params, heads, dim_heads, *,
                           compute_dtype=jnp.bfloat16):
    """x: (B, N, D_MODEL) -> (B, N, D_MODEL)."""
    b, n, d_model = x.shape
    inner = heads * dim_heads
    scale = dim_heads ** (-0.5)

    # Fold 1/sqrt(dh) into the Q projection (exact for power-of-two scales);
    # store weights in the compute dtype (bf16 by default) so the MXU gets its
    # native operands and weight HBM bytes are halved.  Biases stay f32 (added
    # into the f32 accumulator).
    wq = (params["wq"].astype(jnp.float32) * scale).astype(compute_dtype)
    bq = params["bq"].astype(jnp.float32) * scale
    wk = params["wk"].astype(compute_dtype)
    bk = params["bk"].astype(jnp.float32)
    wv = params["wv"].astype(compute_dtype)
    bv = params["bv"].astype(jnp.float32)
    wo = params["wo"].astype(compute_dtype)
    bo = params["bo"].astype(jnp.float32)

    x2d = x.reshape(b * n, d_model)
    # Fused QKV projection: x read from HBM once, three outputs (compute dtype).
    q, k, v = fused_qkv_projection(x2d, wq, bq, wk, bk, wv, bv,
                                   out_dtype=compute_dtype,
                                   compute_dtype=compute_dtype)

    # (B*N, H*DH) -> (B, N, H*DH) is a metadata-only reshape: no HBM transpose.
    q = q.reshape(b, n, inner)
    k = k.reshape(b, n, inner)
    v = v.reshape(b, n, inner)

    out = attention(q, k, v, heads=heads, dim_head=dim_heads,
                    compute_dtype=compute_dtype)

    # Output is already in the fused 'b n (h d)' layout -> straight into fc_o.
    out = linear(out.reshape(b * n, inner), wo, bo,
                 out_dtype=x.dtype, compute_dtype=compute_dtype)
    return out.reshape(b, n, d_model)


def init_params(key, d_model, heads, dim_heads):
    """Matches module init: Linear weights ~ N(0, 0.001), biases = 0."""
    inner = heads * dim_heads
    kq, kk, kv, ko = jax.random.split(key, 4)
    std = 0.001
    return {
        "wq": jax.random.normal(kq, (inner, d_model), jnp.float32) * std,
        "bq": jnp.zeros((inner,), jnp.float32),
        "wk": jax.random.normal(kk, (inner, d_model), jnp.float32) * std,
        "bk": jnp.zeros((inner,), jnp.float32),
        "wv": jax.random.normal(kv, (inner, d_model), jnp.float32) * std,
        "bv": jnp.zeros((inner,), jnp.float32),
        "wo": jax.random.normal(ko, (d_model, inner), jnp.float32) * std,
        "bo": jnp.zeros((d_model,), jnp.float32),
    }


# ---------------------------------------------------------------------------
# Pure-JAX reference for correctness check
# ---------------------------------------------------------------------------
def reference_forward(x, params, heads, dim_heads):
    b, n, d_model = x.shape
    scale = dim_heads ** (-0.5)
    q = x @ params["wq"].T + params["bq"]
    k = x @ params["wk"].T + params["bk"]
    v = x @ params["wv"].T + params["bv"]
    q = q.reshape(b, n, heads, dim_heads).transpose(0, 2, 1, 3)
    k = k.reshape(b, n, heads, dim_heads).transpose(0, 2, 1, 3)
    v = v.reshape(b, n, heads, dim_heads).transpose(0, 2, 1, 3)
    att = jnp.einsum("bhnd,bhmd->bhnm", q, k) * scale
    att = jax.nn.softmax(att, axis=-1)
    out = jnp.einsum("bhnm,bhmd->bhnd", att, v)
    out = out.transpose(0, 2, 1, 3).reshape(b, n, heads * dim_heads)
    return out @ params["wo"].T + params["bo"]


if __name__ == "__main__":
    B, N, D_MODEL = 2, 8, 32
    HEADS, DIM_HEADS = 8, 64

    key = jax.random.PRNGKey(0)
    kp, kx = jax.random.split(key)
    params = init_params(kp, D_MODEL, HEADS, DIM_HEADS)
    x = jax.random.normal(kx, (B, N, D_MODEL), jnp.float32)

    ref = reference_forward(x, params, HEADS, DIM_HEADS)

    # 1) f32 compute path: exact-parity check (tolerance only covers
    #    pl.reciprocal(approx=True) in the softmax denominator).
    out_f32 = jax.block_until_ready(
        self_attention_forward(x, params, HEADS, DIM_HEADS,
                               compute_dtype=jnp.float32))
    np.testing.assert_allclose(np.asarray(out_f32), np.asarray(ref),
                               rtol=2e-3, atol=1e-6)

    # 2) bf16 MXU path (production default): f32 accumulation + f32 softmax
    #    stats; tolerance loosened for bf16 operand rounding.
    out_bf16 = jax.block_until_ready(
        self_attention_forward(x, params, HEADS, DIM_HEADS,
                               compute_dtype=jnp.bfloat16))
    np.testing.assert_allclose(np.asarray(out_bf16), np.asarray(ref),
                               rtol=5e-2, atol=1e-5)

    print("KERNEL_OK")
</pallas_src>

<mosaic_0001>
module attributes {stable_mosaic.version = 11 : i64} {
  func.func @_qkv_kernel(%arg0: i32, %arg1: i32, %arg2: i32, %arg3: memref<16x32xf32, #tpu.memory_space<vmem>>, %arg4: memref<512x32xf32, #tpu.memory_space<vmem>>, %arg5: memref<512x32xf32, #tpu.memory_space<vmem>>, %arg6: memref<512x32xf32, #tpu.memory_space<vmem>>, %arg7: memref<1x512xf32, #tpu.memory_space<vmem>>, %arg8: memref<1x512xf32, #tpu.memory_space<vmem>>, %arg9: memref<1x512xf32, #tpu.memory_space<vmem>>, %arg10: memref<16x512xf32, #tpu.memory_space<vmem>>, %arg11: memref<16x512xf32, #tpu.memory_space<vmem>>, %arg12: memref<16x512xf32, #tpu.memory_space<vmem>>, %arg13: memref<16x512xf32, #tpu.memory_space<vmem>>, %arg14: memref<16x512xf32, #tpu.memory_space<vmem>>, %arg15: memref<16x512xf32, #tpu.memory_space<vmem>>) attributes {dimension_semantics = [#tpu.dimension_semantics<parallel>, #tpu.dimension_semantics<parallel>, #tpu.dimension_semantics<arbitrary>], iteration_bounds = array<i64: 1, 1, 1>, scalar_prefetch = 0 : i64, scratch_operands = 3 : i64, tpu.core_type = #tpu.core_type<tc>, window_params = [{transform_indices = @transform_0, window_bounds = array<i64: 16, 32>}, {transform_indices = @transform_1, window_bounds = array<i64: 512, 32>}, {transform_indices = @transform_2, window_bounds = array<i64: 512, 32>}, {transform_indices = @transform_3, window_bounds = array<i64: 512, 32>}, {transform_indices = @transform_4, window_bounds = array<i64: 1, 512>}, {transform_indices = @transform_5, window_bounds = array<i64: 1, 512>}, {transform_indices = @transform_6, window_bounds = array<i64: 1, 512>}, {transform_indices = @transform_7, window_bounds = array<i64: 16, 512>}, {transform_indices = @transform_8, window_bounds = array<i64: 16, 512>}, {transform_indices = @transform_9, window_bounds = array<i64: 16, 512>}]} {
    %c0_i32 = arith.constant 0 : i32
    %0 = arith.cmpi eq, %arg2, %c0_i32 : i32
    %1 = arith.extui %0 : i1 to i32
    %c0_i32_0 = arith.constant 0 : i32
    %2 = arith.cmpi ne, %1, %c0_i32_0 : i32
    scf.if %2 {
      %cst_24 = arith.constant 0.000000e+00 : f32
      %22 = vector.broadcast %cst_24 : f32 to vector<16x512xf32>
      %c0_25 = arith.constant 0 : index
      %c0_26 = arith.constant 0 : index
      %23 = vector.load %arg13[%c0_25, %c0_26] : memref<16x512xf32, #tpu.memory_space<vmem>>, vector<16x512xf32>
      tpu.vector_store %arg13[%c0_25, %c0_26], %22 {strides = array<i32>} : memref<16x512xf32, #tpu.memory_space<vmem>>, vector<16x512xf32>,
      %cst_27 = arith.constant 0.000000e+00 : f32
      %24 = vector.broadcast %cst_27 : f32 to vector<16x512xf32>
      %c0_28 = arith.constant 0 : index
      %c0_29 = arith.constant 0 : index
      %25 = vector.load %arg14[%c0_28, %c0_29] : memref<16x512xf32, #tpu.memory_space<vmem>>, vector<16x512xf32>
      tpu.vector_store %arg14[%c0_28, %c0_29], %24 {strides = array<i32>} : memref<16x512xf32, #tpu.memory_space<vmem>>, vector<16x512xf32>,
      %cst_30 = arith.constant 0.000000e+00 : f32
      %26 = vector.broadcast %cst_30 : f32 to vector<16x512xf32>
      %c0_31 = arith.constant 0 : index
      %c0_32 = arith.constant 0 : index
      %27 = vector.load %arg15[%c0_31, %c0_32] : memref<16x512xf32, #tpu.memory_space<vmem>>, vector<16x512xf32>
      tpu.vector_store %arg15[%c0_31, %c0_32], %26 {strides = array<i32>} : memref<16x512xf32, #tpu.memory_space<vmem>>, vector<16x512xf32>,
    } else {
    }
    %c0 = arith.constant 0 : index
    %c0_1 = arith.constant 0 : index
    %3 = vector.load %arg3[%c0, %c0_1] : memref<16x32xf32, #tpu.memory_space<vmem>>, vector<16x32xf32>
    %c0_2 = arith.constant 0 : index
    %c0_3 = arith.constant 0 : index
    %4 = vector.load %arg13[%c0_2, %c0_3] : memref<16x512xf32, #tpu.memory_space<vmem>>, vector<16x512xf32>
    %c0_4 = arith.constant 0 : index
    %c0_5 = arith.constant 0 : index
    %5 = vector.load %arg4[%c0_4, %c0_5] : memref<512x32xf32, #tpu.memory_space<vmem>>, vector<512x32xf32>
    %cst = arith.constant dense<0.000000e+00> : vector<16x512xf32>
    %6 = tpu.matmul %3, %5, %cst {dimension_numbers = #tpu.dot_dimension_numbers<[1], [1], [0], [0], [0, 0, 1, 0], [], []>} : vector<16x32xf32>, vector<512x32xf32>, vector<16x512xf32> -> vector<16x512xf32>
    %7 = arith.addf %4, %6 : vector<16x512xf32>
    %c0_6 = arith.constant 0 : index
    %c0_7 = arith.constant 0 : index
    %8 = vector.load %arg13[%c0_6, %c0_7] : memref<16x512xf32, #tpu.memory_space<vmem>>, vector<16x512xf32>
    tpu.vector_store %arg13[%c0_6, %c0_7], %7 {strides = array<i32>} : memref<16x512xf32, #tpu.memory_space<vmem>>, vector<16x512xf32>,
    %c0_8 = arith.constant 0 : index
    %c0_9 = arith.constant 0 : index
    %9 = vector.load %arg14[%c0_8, %c0_9] : memref<16x512xf32, #tpu.memory_space<vmem>>, vector<16x512xf32>
    %c0_10 = arith.constant 0 : index
    %c0_11 = arith.constant 0 : index
    %10 = vector.load %arg5[%c0_10, %c0_11] : memref<512x32xf32, #tpu.memory_space<vmem>>, vector<512x32xf32>
    %cst_12 = arith.constant dense<0.000000e+00> : vector<16x512xf32>
    %11 = tpu.matmul %3, %10, %cst_12 {dimension_numbers = #tpu.dot_dimension_numbers<[1], [1], [0], [0], [0, 0, 1, 0], [], []>} : vector<16x32xf32>, vector<512x32xf32>, vector<16x512xf32> -> vector<16x512xf32>
    %12 = arith.addf %9, %11 : vector<16x512xf32>
    %c0_13 = arith.constant 0 : index
    %c0_14 = arith.constant 0 : index
    %13 = vector.load %arg14[%c0_13, %c0_14] : memref<16x512xf32, #tpu.memory_space<vmem>>, vector<16x512xf32>
    tpu.vector_store %arg14[%c0_13, %c0_14], %12 {strides = array<i32>} : memref<16x512xf32, #tpu.memory_space<vmem>>, vector<16x512xf32>,
    %c0_15 = arith.constant 0 : index
    %c0_16 = arith.constant 0 : index
    %14 = vector.load %arg15[%c0_15, %c0_16] : memref<16x512xf32, #tpu.memory_space<vmem>>, vector<16x512xf32>
    %c0_17 = arith.constant 0 : index
    %c0_18 = arith.constant 0 : index
    %15 = vector.load %arg6[%c0_17, %c0_18] : memref<512x32xf32, #tpu.memory_space<vmem>>, vector<512x32xf32>
    %cst_19 = arith.constant dense<0.000000e+00> : vector<16x512xf32>
    %16 = tpu.matmul %3, %15, %cst_19 {dimension_numbers = #tpu.dot_dimension_numbers<[1], [1], [0], [0], [0, 0, 1, 0], [], []>} : vector<16x32xf32>, vector<512x32xf32>, vector<16x512xf32> -> vector<16x512xf32>
    %17 = arith.addf %14, %16 : vector<16x512xf32>
    %c0_20 = arith.constant 0 : index
    %c0_21 = arith.constant 0 : index
    %18 = vector.load %arg15[%c0_20, %c0_21] : memref<16x512xf32, #tpu.memory_space<vmem>>, vector<16x512xf32>
    tpu.vector_store %arg15[%c0_20, %c0_21], %17 {strides = array<i32>} : memref<16x512xf32, #tpu.memory_space<vmem>>, vector<16x512xf32>,
    %c0_i32_22 = arith.constant 0 : i32
    %19 = arith.cmpi eq, %arg2, %c0_i32_22 : i32
    %20 = arith.extui %19 : i1 to i32
    %c0_i32_23 = arith.constant 0 : i32
    %21 = arith.cmpi ne, %20, %c0_i32_23 : i32
    scf.if %21 {
      %c0_24 = arith.constant 0 : index
      %c0_25 = arith.constant 0 : index
      %22 = vector.load %arg13[%c0_24, %c0_25] : memref<16x512xf32, #tpu.memory_space<vmem>>, vector<16x512xf32>
      %c0_26 = arith.constant 0 : index
      %c0_27 = arith.constant 0 : index
      %23 = vector.load %arg7[%c0_26, %c0_27] : memref<1x512xf32, #tpu.memory_space<vmem>>, vector<1x512xf32>
      %24 = vector.broadcast %23 : vector<1x512xf32> to vector<16x512xf32>
      %25 = arith.addf %22, %24 : vector<16x512xf32>
      %c0_28 = arith.constant 0 : index
      %c0_29 = arith.constant 0 : index
      %26 = vector.load %arg10[%c0_28, %c0_29] : memref<16x512xf32, #tpu.memory_space<vmem>>, vector<16x512xf32>
      tpu.vector_store %arg10[%c0_28, %c0_29], %25 {strides = array<i32>} : memref<16x512xf32, #tpu.memory_space<vmem>>, vector<16x512xf32>,
      %c0_30 = arith.constant 0 : index
      %c0_31 = arith.constant 0 : index
      %27 = vector.load %arg14[%c0_30, %c0_31] : memref<16x512xf32, #tpu.memory_space<vmem>>, vector<16x512xf32>
      %c0_32 = arith.constant 0 : index
      %c0_33 = arith.constant 0 : index
      %28 = vector.load %arg8[%c0_32, %c0_33] : memref<1x512xf32, #tpu.memory_space<vmem>>, vector<1x512xf32>
      %29 = vector.broadcast %28 : vector<1x512xf32> to vector<16x512xf32>
      %30 = arith.addf %27, %29 : vector<16x512xf32>
      %c0_34 = arith.constant 0 : index
      %c0_35 = arith.constant 0 : index
      %31 = vector.load %arg11[%c0_34, %c0_35] : memref<16x512xf32, #tpu.memory_space<vmem>>, vector<16x512xf32>
      tpu.vector_store %arg11[%c0_34, %c0_35], %30 {strides = array<i32>} : memref<16x512xf32, #tpu.memory_space<vmem>>, vector<16x512xf32>,
      %c0_36 = arith.constant 0 : index
      %c0_37 = arith.constant 0 : index
      %32 = vector.load %arg15[%c0_36, %c0_37] : memref<16x512xf32, #tpu.memory_space<vmem>>, vector<16x512xf32>
      %c0_38 = arith.constant 0 : index
      %c0_39 = arith.constant 0 : index
      %33 = vector.load %arg9[%c0_38, %c0_39] : memref<1x512xf32, #tpu.memory_space<vmem>>, vector<1x512xf32>
      %34 = vector.broadcast %33 : vector<1x512xf32> to vector<16x512xf32>
      %35 = arith.addf %32, %34 : vector<16x512xf32>
      %c0_40 = arith.constant 0 : index
      %c0_41 = arith.constant 0 : index
      %36 = vector.load %arg12[%c0_40, %c0_41] : memref<16x512xf32, #tpu.memory_space<vmem>>, vector<16x512xf32>
      tpu.vector_store %arg12[%c0_40, %c0_41], %35 {strides = array<i32>} : memref<16x512xf32, #tpu.memory_space<vmem>>, vector<16x512xf32>,
    } else {
    }
    return
  }
  func.func @transform_0(%arg0: i32, %arg1: i32, %arg2: i32) -> (i32, i32) {
    %c0_i32 = arith.constant 0 : i32
    return %arg1, %arg2 : i32, i32
  }
  func.func @transform_1(%arg0: i32, %arg1: i32, %arg2: i32) -> (i32, i32) {
    %c0_i32 = arith.constant 0 : i32
    return %arg0, %arg2 : i32, i32
  }
  func.func @transform_2(%arg0: i32, %arg1: i32, %arg2: i32) -> (i32, i32) {
    %c0_i32 = arith.constant 0 : i32
    return %arg0, %arg2 : i32, i32
  }
  func.func @transform_3(%arg0: i32, %arg1: i32, %arg2: i32) -> (i32, i32) {
    %c0_i32 = arith.constant 0 : i32
    return %arg0, %arg2 : i32, i32
  }
  func.func @transform_4(%arg0: i32, %arg1: i32, %arg2: i32) -> (i32, i32) {
    %c0_i32 = arith.constant 0 : i32
    %c0_i32_0 = arith.constant 0 : i32
    return %c0_i32, %arg0 : i32, i32
  }
  func.func @transform_5(%arg0: i32, %arg1: i32, %arg2: i32) -> (i32, i32) {
    %c0_i32 = arith.constant 0 : i32
    %c0_i32_0 = arith.constant 0 : i32
    return %c0_i32, %arg0 : i32, i32
  }
  func.func @transform_6(%arg0: i32, %arg1: i32, %arg2: i32) -> (i32, i32) {
    %c0_i32 = arith.constant 0 : i32
    %c0_i32_0 = arith.constant 0 : i32
    return %c0_i32, %arg0 : i32, i32
  }
  func.func @transform_7(%arg0: i32, %arg1: i32, %arg2: i32) -> (i32, i32) {
    %c0_i32 = arith.constant 0 : i32
    return %arg1, %arg0 : i32, i32
  }
  func.func @transform_8(%arg0: i32, %arg1: i32, %arg2: i32) -> (i32, i32) {
    %c0_i32 = arith.constant 0 : i32
    return %arg1, %arg0 : i32, i32
  }
  func.func @transform_9(%arg0: i32, %arg1: i32, %arg2: i32) -> (i32, i32) {
    %c0_i32 = arith.constant 0 : i32
    return %arg1, %arg0 : i32, i32
  }
}

</mosaic_0001>

<llo_original>
// kernel: tpu_custom_call.1
$region0: #{tpu_custom_call.1}
  #allocation0 [shape = 'u32[]', space=smem, size = 0x4, offset = 0x4, fixed_abs, tag = 'smem constant byte address 0x4 - core index']
  #allocation1 [shape = 'u32[144,128]{1,0:T(1,128)}', space=vmem, size = 0x12000, scoped, tag = 'internal scratch']
  #allocation2 [shape = 'f32[16,512]{1,0:T(8,128)}', space=vmem, size = 0x8000, scoped, tag = 'scratch operand']
  #allocation3 [shape = 'f32[16,512]{1,0:T(8,128)}', space=vmem, size = 0x8000, scoped, tag = 'scratch operand']
  #allocation4 [shape = 'f32[16,512]{1,0:T(8,128)}', space=vmem, size = 0x8000, scoped, tag = 'scratch operand']
  %s0 = inlined_call_operand.vmem [shape: f32[16,32], index: 0, kind: input, shape index: {}]
  %s1 = inlined_call_operand.vmem [shape: f32[512,32], index: 1, kind: input, shape index: {}]
  %s2 = inlined_call_operand.vmem [shape: f32[512,32], index: 2, kind: input, shape index: {}]
  %s3 = inlined_call_operand.vmem [shape: f32[512,32], index: 3, kind: input, shape index: {}]
  %s4 = inlined_call_operand.vmem [shape: f32[1,512], index: 4, kind: input, shape index: {}]
  %s5 = inlined_call_operand.vmem [shape: f32[1,512], index: 5, kind: input, shape index: {}]
  %s6 = inlined_call_operand.vmem [shape: f32[1,512], index: 6, kind: input, shape index: {}]
  %s7 = inlined_call_operand.hbm [shape: f32[16,512], index: 7, kind: output, shape index: {0}]
  %s8 = inlined_call_operand.hbm [shape: f32[16,512], index: 8, kind: output, shape index: {1}]
  %s9 = inlined_call_operand.hbm [shape: f32[16,512], index: 9, kind: output, shape index: {2}]
  %10 = xla_tuple %s7, %s8, %s9
  %s11 = sld [smem:[#allocation0]]
  $region62: #{tpu_custom_call.1} parent=0
    _
  %s13 = ssub.s32 1, %s11
  %s14 = scalar_select 0, %s13, %s11
  $region1: #{tpu_custom_call.1} parent=0
    #allocation5 [shape = 'u8[32768]{0}', space=vmem, size = 0x8000, scoped, tag = 'output window, operand 0, single buffered']
    #allocation6 [shape = 's32[1]{0}', space=sflag, size = 0x4, scoped, tag = 'scoped memory for tpu_custom_call.1']
    #allocation7 [shape = 'u8[32768]{0}', space=vmem, size = 0x8000, scoped, tag = 'output window, operand 1, single buffered']
    #allocation8 [shape = 's32[1]{0}', space=sflag, size = 0x4, scoped, tag = 'scoped memory for tpu_custom_call.1']
    #allocation9 [shape = 'u8[32768]{0}', space=vmem, size = 0x8000, scoped, tag = 'output window, operand 2, single buffered']
    %15 = vsyncpa [#allocation6], 0
    %16 = vsyncpa [#allocation8], 0
    // Predicated region
    $region2: #{tpu_custom_call.1} parent=1 // pred_check
      _
    $region3: #{tpu_custom_call.1} parent=1 // pred_check_branch
      %18 = sbr.rel (0) target = $region5
    $region4: #{tpu_custom_call.1} parent=1 // pred_region
      _
    $region5: #{tpu_custom_call.1} parent=1 // pred_fallthru
      _
    // Predicated region
    $region6: #{tpu_custom_call.1} parent=1 // pred_check
      _
    $region7: #{tpu_custom_call.1} parent=1 // pred_check_branch
      %20 = sbr.rel (0) target = $region9
    $region8: #{tpu_custom_call.1} parent=1 // pred_region
      _
    $region9: #{tpu_custom_call.1} parent=1 // pred_fallthru
      _
    // Predicated region
    $region10: #{tpu_custom_call.1} parent=1 // pred_check
      _
    $region11: #{tpu_custom_call.1} parent=1 // pred_check_branch
      %22 = sbr.rel (0) target = $region13
    $region12: #{tpu_custom_call.1} parent=1 // pred_region
      _
    $region13: #{tpu_custom_call.1} parent=1 // pred_fallthru
      _
    // Predicated region
    $region14: #{tpu_custom_call.1} parent=1 // pred_check
      _
    $region15: #{tpu_custom_call.1} parent=1 // pred_check_branch
      %24 = sbr.rel (0) target = $region17
    $region16: #{tpu_custom_call.1} parent=1 // pred_region
      _
    $region17: #{tpu_custom_call.1} parent=1 // pred_fallthru
      _
    // Predicated region
    $region18: #{tpu_custom_call.1} parent=1 // pred_check
      _
    $region19: #{tpu_custom_call.1} parent=1 // pred_check_branch
      %26 = sbr.rel (0) target = $region21
    $region20: #{tpu_custom_call.1} parent=1 // pred_region
      _
    $region21: #{tpu_custom_call.1} parent=1 // pred_fallthru
      _
    // Predicated region
    $region22: #{tpu_custom_call.1} parent=1 // pred_check
      _
    $region23: #{tpu_custom_call.1} parent=1 // pred_check_branch
      %28 = sbr.rel (0) target = $region25
    $region24: #{tpu_custom_call.1} parent=1 // pred_region
      _
    $region25: #{tpu_custom_call.1} parent=1 // pred_fallthru
      _
    // Predicated region
    $region26: #{tpu_custom_call.1} parent=1 // pred_check
      _
    $region27: #{tpu_custom_call.1} parent=1 // pred_check_branch
      %30 = sbr.rel (0) target = $region29
    $region28: #{tpu_custom_call.1} parent=1 // pred_region
      _
    $region29: #{tpu_custom_call.1} parent=1 // pred_fallthru
      _
    %p31 = scmp.eq.s32.totalorder 0, 0
    // Predicated region
    $region30: #{tpu_custom_call.1} parent=1 // pred_check
      %p32 = pneg %p31
    $region31: #{tpu_custom_call.1} parent=1 // pred_check_branch
      %34 = sbr.rel (%p32) target = $region33
    $region32: #{tpu_custom_call.1} parent=1 // pred_region
      %35 = vst [vmem:[#allocation2] sm:$0xff] 0.0
      %36 = vst [vmem:[#allocation2 + $0x8] sm:$0xff] 0.0
      %37 = vst [vmem:[#allocation2 + $0x10] sm:$0xff] 0.0
      %38 = vst [vmem:[#allocation2 + $0x18] sm:$0xff] 0.0
      %39 = vst [vmem:[#allocation2 + $0x20] sm:$0xff] 0.0
      %40 = vst [vmem:[#allocation2 + $0x28] sm:$0xff] 0.0
      %41 = vst [vmem:[#allocation2 + $0x30] sm:$0xff] 0.0
      %42 = vst [vmem:[#allocation2 + $0x38] sm:$0xff] 0.0
      %43 = vst [vmem:[#allocation3] sm:$0xff] 0.0
      %44 = vst [vmem:[#allocation3 + $0x8] sm:$0xff] 0.0
      %45 = vst [vmem:[#allocation3 + $0x10] sm:$0xff] 0.0
      %46 = vst [vmem:[#allocation3 + $0x18] sm:$0xff] 0.0
      %47 = vst [vmem:[#allocation3 + $0x20] sm:$0xff] 0.0
      %48 = vst [vmem:[#allocation3 + $0x28] sm:$0xff] 0.0
      %49 = vst [vmem:[#allocation3 + $0x30] sm:$0xff] 0.0
      %50 = vst [vmem:[#allocation3 + $0x38] sm:$0xff] 0.0
      %51 = vst [vmem:[#allocation4] sm:$0xff] 0.0
      %52 = vst [vmem:[#allocation4 + $0x8] sm:$0xff] 0.0
      %53 = vst [vmem:[#allocation4 + $0x10] sm:$0xff] 0.0
      %54 = vst [vmem:[#allocation4 + $0x18] sm:$0xff] 0.0
      %55 = vst [vmem:[#allocation4 + $0x20] sm:$0xff] 0.0
      %56 = vst [vmem:[#allocation4 + $0x28] sm:$0xff] 0.0
      %57 = vst [vmem:[#allocation4 + $0x30] sm:$0xff] 0.0
      %58 = vst [vmem:[#allocation4 + $0x38] sm:$0xff] 0.0
    $region33: #{tpu_custom_call.1} parent=1 // pred_fallthru
      _
    %v59 = vld [vmem:[%s0] sm:$0xff]
    %v60 = vld [vmem:[%s0 + $0x8] sm:$0xff]
    %v61 = vld [vmem:[#allocation2] sm:$0xff]
    %v62 = vld [vmem:[#allocation2 + $0x8] sm:$0xff]
    %v63 = vld [vmem:[#allocation2 + $0x10] sm:$0xff]
    %v64 = vld [vmem:[#allocation2 + $0x18] sm:$0xff]
    %v65 = vld [vmem:[#allocation2 + $0x20] sm:$0xff]
    %v66 = vld [vmem:[#allocation2 + $0x28] sm:$0xff]
    %v67 = vld [vmem:[#allocation2 + $0x30] sm:$0xff]
    %v68 = vld [vmem:[#allocation2 + $0x38] sm:$0xff]
    %v69 = vld [vmem:[%s1] sm:$0xff]
    %v70 = vld [vmem:[%s1 + $0x8] sm:$0xff]
    %v71 = vld [vmem:[%s1 + $0x10] sm:$0xff]
    %v72 = vld [vmem:[%s1 + $0x18] sm:$0xff]
    %v73 = vld [vmem:[%s1 + $0x20] sm:$0xff]
    %v74 = vld [vmem:[%s1 + $0x28] sm:$0xff]
    %v75 = vld [vmem:[%s1 + $0x30] sm:$0xff]
    %v76 = vld [vmem:[%s1 + $0x38] sm:$0xff]
    %v77 = vld [vmem:[%s1 + $0x40] sm:$0xff]
    %v78 = vld [vmem:[%s1 + $0x48] sm:$0xff]
    %v79 = vld [vmem:[%s1 + $0x50] sm:$0xff]
    %v80 = vld [vmem:[%s1 + $0x58] sm:$0xff]
    %v81 = vld [vmem:[%s1 + $0x60] sm:$0xff]
    %v82 = vld [vmem:[%s1 + $0x68] sm:$0xff]
    %v83 = vld [vmem:[%s1 + $0x70] sm:$0xff]
    %v84 = vld [vmem:[%s1 + $0x78] sm:$0xff]
    %v85 = vld [vmem:[%s1 + $0x80] sm:$0xff]
    %v86 = vld [vmem:[%s1 + $0x88] sm:$0xff]
    %v87 = vld [vmem:[%s1 + $0x90] sm:$0xff]
    %v88 = vld [vmem:[%s1 + $0x98] sm:$0xff]
    %v89 = vld [vmem:[%s1 + $0xa0] sm:$0xff]
    %v90 = vld [vmem:[%s1 + $0xa8] sm:$0xff]
    %v91 = vld [vmem:[%s1 + $0xb0] sm:$0xff]
    %v92 = vld [vmem:[%s1 + $0xb8] sm:$0xff]
    %v93 = vld [vmem:[%s1 + $0xc0] sm:$0xff]
    %v94 = vld [vmem:[%s1 + $0xc8] sm:$0xff]
    %v95 = vld [vmem:[%s1 + $0xd0] sm:$0xff]
    %v96 = vld [vmem:[%s1 + $0xd8] sm:$0xff]
    %v97 = vld [vmem:[%s1 + $0xe0] sm:$0xff]
    %v98 = vld [vmem:[%s1 + $0xe8] sm:$0xff]
    %v99 = vld [vmem:[%s1 + $0xf0] sm:$0xff]
    %v100 = vld [vmem:[%s1 + $0xf8] sm:$0xff]
    %v101 = vld [vmem:[%s1 + $0x100] sm:$0xff]
    %v102 = vld [vmem:[%s1 + $0x108] sm:$0xff]
    %v103 = vld [vmem:[%s1 + $0x110] sm:$0xff]
    %v104 = vld [vmem:[%s1 + $0x118] sm:$0xff]
    %v105 = vld [vmem:[%s1 + $0x120] sm:$0xff]
    %v106 = vld [vmem:[%s1 + $0x128] sm:$0xff]
    %v107 = vld [vmem:[%s1 + $0x130] sm:$0xff]
    %v108 = vld [vmem:[%s1 + $0x138] sm:$0xff]
    %v109 = vld [vmem:[%s1 + $0x140] sm:$0xff]
    %v110 = vld [vmem:[%s1 + $0x148] sm:$0xff]
    %v111 = vld [vmem:[%s1 + $0x150] sm:$0xff]
    %v112 = vld [vmem:[%s1 + $0x158] sm:$0xff]
    %v113 = vld [vmem:[%s1 + $0x160] sm:$0xff]
    %v114 = vld [vmem:[%s1 + $0x168] sm:$0xff]
    %v115 = vld [vmem:[%s1 + $0x170] sm:$0xff]
    %v116 = vld [vmem:[%s1 + $0x178] sm:$0xff]
    %v117 = vld [vmem:[%s1 + $0x180] sm:$0xff]
    %v118 = vld [vmem:[%s1 + $0x188] sm:$0xff]
    %v119 = vld [vmem:[%s1 + $0x190] sm:$0xff]
    %v120 = vld [vmem:[%s1 + $0x198] sm:$0xff]
    %v121 = vld [vmem:[%s1 + $0x1a0] sm:$0xff]
    %v122 = vld [vmem:[%s1 + $0x1a8] sm:$0xff]
    %v123 = vld [vmem:[%s1 + $0x1b0] sm:$0xff]
    %v124 = vld [vmem:[%s1 + $0x1b8] sm:$0xff]
    %v125 = vld [vmem:[%s1 + $0x1c0] sm:$0xff]
    %v126 = vld [vmem:[%s1 + $0x1c8] sm:$0xff]
    %v127 = vld [vmem:[%s1 + $0x1d0] sm:$0xff]
    %v128 = vld [vmem:[%s1 + $0x1d8] sm:$0xff]
    %v129 = vld [vmem:[%s1 + $0x1e0] sm:$0xff]
    %v130 = vld [vmem:[%s1 + $0x1e8] sm:$0xff]
    %v131 = vld [vmem:[%s1 + $0x1f0] sm:$0xff]
    %v132 = vld [vmem:[%s1 + $0x1f8] sm:$0xff]
    %vm133 = vcmask 261120
    %v135 = vsel %vm133, %v59, 0
    %v138 = vsel %vm133, %v60, 0
    %v141 = vsel %vm133, %v69, 0
    %v144 = vsel %vm133, %v70, 0
    %v147 = vsel %vm133, %v71, 0
    %v150 = vsel %vm133, %v72, 0
    %v153 = vsel %vm133, %v73, 0
    %v156 = vsel %vm133, %v74, 0
    %v159 = vsel %vm133, %v75, 0
    %v162 = vsel %vm133, %v76, 0
    %v165 = vsel %vm133, %v77, 0
    %v168 = vsel %vm133, %v78, 0
    %v171 = vsel %vm133, %v79, 0
    %v174 = vsel %vm133, %v80, 0
    %v177 = vsel %vm133, %v81, 0
    %v180 = vsel %vm133, %v82, 0
    %v183 = vsel %vm133, %v83, 0
    %v186 = vsel %vm133, %v84, 0
    %v189 = vsel %vm133, %v85, 0
    %v192 = vsel %vm133, %v86, 0
    %v195 = vsel %vm133, %v87, 0
    %v198 = vsel %vm133, %v88, 0
    %v201 = vsel %vm133, %v89, 0
    %v204 = vsel %vm133, %v90, 0
    %v207 = vsel %vm133, %v91, 0
    %v210 = vsel %vm133, %v92, 0
    %v213 = vsel %vm133, %v93, 0
    %v216 = vsel %vm133, %v94, 0
    %v219 = vsel %vm133, %v95, 0
    %v222 = vsel %vm133, %v96, 0
    %v225 = vsel %vm133, %v97, 0
    %v228 = vsel %vm133, %v98, 0
    %v231 = vsel %vm133, %v99, 0
    %v234 = vsel %vm133, %v100, 0
    %v237 = vsel %vm133, %v101, 0
    %v240 = vsel %vm133, %v102, 0
    %v243 = vsel %vm133, %v103, 0
    %v246 = vsel %vm133, %v104, 0
    %v249 = vsel %vm133, %v105, 0
    %v252 = vsel %vm133, %v106, 0
    %v255 = vsel %vm133, %v107, 0
    %v258 = vsel %vm133, %v108, 0
    %v261 = vsel %vm133, %v109, 0
    %v264 = vsel %vm133, %v110, 0
    %v267 = vsel %vm133, %v111, 0
    %v270 = vsel %vm133, %v112, 0
    %v273 = vsel %vm133, %v113, 0
    %v276 = vsel %vm133, %v114, 0
    %v279 = vsel %vm133, %v115, 0
    %v282 = vsel %vm133, %v116, 0
    %v285 = vsel %vm133, %v117, 0
    %v288 = vsel %vm133, %v118, 0
    %v291 = vsel %vm133, %v119, 0
    %v294 = vsel %vm133, %v120, 0
    %v297 = vsel %vm133, %v121, 0
    %v300 = vsel %vm133, %v122, 0
    %v303 = vsel %vm133, %v123, 0
    %v306 = vsel %vm133, %v124, 0
    %v309 = vsel %vm133, %v125, 0
    %v312 = vsel %vm133, %v126, 0
    %v315 = vsel %vm133, %v127, 0
    %v318 = vsel %vm133, %v128, 0
    %v321 = vsel %vm133, %v129, 0
    %v324 = vsel %vm133, %v130, 0
    %v327 = vsel %vm133, %v131, 0
    %v330 = vsel %vm133, %v132, 0
    %332 = vmatprep.subr.mxu0 0.0
    %333 = vmatpush1.xpose.msra.mxu0 %v141
    %334 = vmatprep.subr.mxu0 0.0
    %335 = vmatpush1.xpose.msra.mxu0 %v144
    %336 = vmatprep.subr.mxu0 0.0
    %337 = vmatpush1.xpose.msra.mxu0 %v147
    %338 = vmatprep.subr.mxu0 0.0
    %339 = vmatpush1.xpose.msra.mxu0 %v150
    %340 = vmatprep.subr.mxu0 0.0
    %341 = vmatpush1.xpose.msra.mxu0 %v153
    %342 = vmatprep.subr.mxu0 0.0
    %343 = vmatpush1.xpose.msra.mxu0 %v156
    %344 = vmatprep.subr.mxu0 0.0
    %345 = vmatpush1.xpose.msra.mxu0 %v159
    %346 = vmatprep.subr.mxu0 0.0
    %347 = vmatpush1.xpose.msra.mxu0 %v162
    %348 = vmatprep.subr.mxu0 0.0
    %349 = vmatpush1.xpose.msra.mxu0 %v165
    %350 = vmatprep.subr.mxu0 0.0
    %351 = vmatpush1.xpose.msra.mxu0 %v168
    %352 = vmatprep.subr.mxu0 0.0
    %353 = vmatpush1.xpose.msra.mxu0 %v171
    %354 = vmatprep.subr.mxu0 0.0
    %355 = vmatpush1.xpose.msra.mxu0 %v174
    %356 = vmatprep.subr.mxu0 0.0
    %357 = vmatpush1.xpose.msra.mxu0 %v177
    %358 = vmatprep.subr.mxu0 0.0
    %359 = vmatpush1.xpose.msra.mxu0 %v180
    %360 = vmatprep.subr.mxu0 0.0
    %361 = vmatpush1.xpose.msra.mxu0 %v183
    %362 = vmatprep.subr.mxu0 0.0
    %363 = vmatpush1.xpose.msra.mxu0 %v186
    %364 = vmatprep.subr.mxu0 0.0
    %365 = vmatpush1.xpose.msra.mxu0 %v189
    %366 = vmatprep.subr.mxu0 0.0
    %367 = vmatpush1.xpose.msra.mxu0 %v192
    %368 = vmatprep.subr.mxu0 0.0
    %369 = vmatpush1.xpose.msra.mxu0 %v195
    %370 = vmatprep.subr.mxu0 0.0
    %371 = vmatpush1.xpose.msra.mxu0 %v198
    %372 = vmatprep.subr.mxu0 0.0
    %373 = vmatpush1.xpose.msra.mxu0 %v201
    %374 = vmatprep.subr.mxu0 0.0
    %375 = vmatpush1.xpose.msra.mxu0 %v204
    %376 = vmatprep.subr.mxu0 0.0
    %377 = vmatpush1.xpose.msra.mxu0 %v207
    %378 = vmatprep.subr.mxu0 0.0
    %379 = vmatpush1.xpose.msra.mxu0 %v210
    %380 = vmatprep.subr.mxu0 0.0
    %381 = vmatpush1.xpose.msra.mxu0 %v213
    %382 = vmatprep.subr.mxu0 0.0
    %383 = vmatpush1.xpose.msra.mxu0 %v216
    %384 = vmatprep.subr.mxu0 0.0
    %385 = vmatpush1.xpose.msra.mxu0 %v219
    %386 = vmatprep.subr.mxu0 0.0
    %387 = vmatpush1.xpose.msra.mxu0 %v222
    %388 = vmatprep.subr.mxu0 0.0
    %389 = vmatpush1.xpose.msra.mxu0 %v225
    %390 = vmatprep.subr.mxu0 0.0
    %391 = vmatpush1.xpose.msra.mxu0 %v228
    %392 = vmatprep.subr.mxu0 0.0
    %393 = vmatpush1.xpose.msra.mxu0 %v231
    %394 = vmatprep.subr.mxu0 0.0
    %395 = vmatpush1.xpose.msra.mxu0 %v234
    %396 = vmatprep.mubr.f32.mxu0 0.0
    %397 = vmatmul.mubr.f32.gmra.mrb[0].mxu0 %v135
    %v398 = vpop.f32.mrb[0].mxu0
    %v399 = vadd.f32 0.0, %v398
    %v400 = vpop.f32.mrb[0].mxu0
    %v401 = vadd.f32 0.0, %v400
    %402 = vmatprep.mubr.f32.mxu0 0.0
    %403 = vmatmul.mubr.f32.gmra.mrb[0].mxu0 %v138
    %v404 = vpop.f32.mrb[0].mxu0
    %v405 = vadd.f32 0.0, %v404
    %v406 = vpop.f32.mrb[0].mxu0
    %v407 = vadd.f32 0.0, %v406
    %408 = vdwg.mxu0
    %409 = vmatprep.subr.mxu0 0.0
    %410 = vmatpush1.xpose.msra.mxu0 %v237
    %411 = vmatprep.subr.mxu0 0.0
    %412 = vmatpush1.xpose.msra.mxu0 %v240
    %413 = vmatprep.subr.mxu0 0.0
    %414 = vmatpush1.xpose.msra.mxu0 %v243
    %415 = vmatprep.subr.mxu0 0.0
    %416 = vmatpush1.xpose.msra.mxu0 %v246
    %417 = vmatprep.subr.mxu0 0.0
    %418 = vmatpush1.xpose.msra.mxu0 %v249
    %419 = vmatprep.subr.mxu0 0.0
    %420 = vmatpush1.xpose.msra.mxu0 %v252
    %421 = vmatprep.subr.mxu0 0.0
    %422 = vmatpush1.xpose.msra.mxu0 %v255
    %423 = vmatprep.subr.mxu0 0.0
    %424 = vmatpush1.xpose.msra.mxu0 %v258
    %425 = vmatprep.subr.mxu0 0.0
    %426 = vmatpush1.xpose.msra.mxu0 %v261
    %427 = vmatprep.subr.mxu0 0.0
    %428 = vmatpush1.xpose.msra.mxu0 %v264
    %429 = vmatprep.subr.mxu0 0.0
    %430 = vmatpush1.xpose.msra.mxu0 %v267
    %431 = vmatprep.subr.mxu0 0.0
    %432 = vmatpush1.xpose.msra.mxu0 %v270
    %433 = vmatprep.subr.mxu0 0.0
    %434 = vmatpush1.xpose.msra.mxu0 %v273
    %435 = vmatprep.subr.mxu0 0.0
    %436 = vmatpush1.xpose.msra.mxu0 %v276
    %437 = vmatprep.subr.mxu0 0.0
    %438 = vmatpush1.xpose.msra.mxu0 %v279
    %439 = vmatprep.subr.mxu0 0.0
    %440 = vmatpush1.xpose.msra.mxu0 %v282
    %441 = vmatprep.subr.mxu0 0.0
    %442 = vmatpush1.xpose.msra.mxu0 %v285
    %443 = vmatprep.subr.mxu0 0.0
    %444 = vmatpush1.xpose.msra.mxu0 %v288
    %445 = vmatprep.subr.mxu0 0.0
    %446 = vmatpush1.xpose.msra.mxu0 %v291
    %447 = vmatprep.subr.mxu0 0.0
    %448 = vmatpush1.xpose.msra.mxu0 %v294
    %449 = vmatprep.subr.mxu0 0.0
    %450 = vmatpush1.xpose.msra.mxu0 %v297
    %451 = vmatprep.subr.mxu0 0.0
    %452 = vmatpush1.xpose.msra.mxu0 %v300
    %453 = vmatprep.subr.mxu0 0.0
    %454 = vmatpush1.xpose.msra.mxu0 %v303
    %455 = vmatprep.subr.mxu0 0.0
    %456 = vmatpush1.xpose.msra.mxu0 %v306
    %457 = vmatprep.subr.mxu0 0.0
    %458 = vmatpush1.xpose.msra.mxu0 %v309
    %459 = vmatprep.subr.mxu0 0.0
    %460 = vmatpush1.xpose.msra.mxu0 %v312
    %461 = vmatprep.subr.mxu0 0.0
    %462 = vmatpush1.xpose.msra.mxu0 %v315
    %463 = vmatprep.subr.mxu0 0.0
    %464 = vmatpush1.xpose.msra.mxu0 %v318
    %465 = vmatprep.subr.mxu0 0.0
    %466 = vmatpush1.xpose.msra.mxu0 %v321
    %467 = vmatprep.subr.mxu0 0.0
    %468 = vmatpush1.xpose.msra.mxu0 %v324
    %469 = vmatprep.subr.mxu0 0.0
    %470 = vmatpush1.xpose.msra.mxu0 %v327
    %471 = vmatprep.subr.mxu0 0.0
    %472 = vmatpush1.xpose.msra.mxu0 %v330
    %473 = vmatprep.mubr.f32.mxu0 0.0
    %474 = vmatmul.mubr.f32.gmra.mrb[0].mxu0 %v135
    %v475 = vpop.f32.mrb[0].mxu0
    %v476 = vadd.f32 0.0, %v475
    %v477 = vpop.f32.mrb[0].mxu0
    %v478 = vadd.f32 0.0, %v477
    %479 = vmatprep.mubr.f32.mxu0 0.0
    %480 = vmatmul.mubr.f32.gmra.mrb[0].mxu0 %v138
    %v481 = vpop.f32.mrb[0].mxu0
    %v482 = vadd.f32 0.0, %v481
    %v483 = vpop.f32.mrb[0].mxu0
    %v484 = vadd.f32 0.0, %v483
    %485 = vdwg.mxu0
    %v486 = vadd.f32 %v61, %v399
    %v487 = vadd.f32 %v62, %v401
    %v488 = vadd.f32 %v63, %v476
    %v489 = vadd.f32 %v64, %v478
    %v490 = vadd.f32 %v65, %v405
    %v491 = vadd.f32 %v66, %v407
    %v492 = vadd.f32 %v67, %v482
    %v493 = vadd.f32 %v68, %v484
    %494 = vst [vmem:[#allocation2] sm:$0xff] %v486
    %495 = vst [vmem:[#allocation2 + $0x8] sm:$0xff] %v487
    %496 = vst [vmem:[#allocation2 + $0x10] sm:$0xff] %v488
    %497 = vst [vmem:[#allocation2 + $0x18] sm:$0xff] %v489
    %498 = vst [vmem:[#allocation2 + $0x20] sm:$0xff] %v490
    %499 = vst [vmem:[#allocation2 + $0x28] sm:$0xff] %v491
    %500 = vst [vmem:[#allocation2 + $0x30] sm:$0xff] %v492
    %501 = vst [vmem:[#allocation2 + $0x38] sm:$0xff] %v493
    %v502 = vld [vmem:[#allocation3] sm:$0xff]
    %v503 = vld [vmem:[#allocation3 + $0x8] sm:$0xff]
    %v504 = vld [vmem:[#allocation3 + $0x10] sm:$0xff]
    %v505 = vld [vmem:[#allocation3 + $0x18] sm:$0xff]
    %v506 = vld [vmem:[#allocation3 + $0x20] sm:$0xff]
    %v507 = vld [vmem:[#allocation3 + $0x28] sm:$0xff]
    %v508 = vld [vmem:[#allocation3 + $0x30] sm:$0xff]
    %v509 = vld [vmem:[#allocation3 + $0x38] sm:$0xff]
    %v510 = vld [vmem:[%s2] sm:$0xff]
    %v511 = vld [vmem:[%s2 + $0x8] sm:$0xff]
    %v512 = vld [vmem:[%s2 + $0x10] sm:$0xff]
    %v513 = vld [vmem:[%s2 + $0x18] sm:$0xff]
    %v514 = vld [vmem:[%s2 + $0x20] sm:$0xff]
    %v515 = vld [vmem:[%s2 + $0x28] sm:$0xff]
    %v516 = vld [vmem:[%s2 + $0x30] sm:$0xff]
    %v517 = vld [vmem:[%s2 + $0x38] sm:$0xff]
    %v518 = vld [vmem:[%s2 + $0x40] sm:$0xff]
    %v519 = vld [vmem:[%s2 + $0x48] sm:$0xff]
    %v520 = vld [vmem:[%s2 + $0x50] sm:$0xff]
    %v521 = vld [vmem:[%s2 + $0x58] sm:$0xff]
    %v522 = vld [vmem:[%s2 + $0x60] sm:$0xff]
    %v523 = vld [vmem:[%s2 + $0x68] sm:$0xff]
    %v524 = vld [vmem:[%s2 + $0x70] sm:$0xff]
    %v525 = vld [vmem:[%s2 + $0x78] sm:$0xff]
    %v526 = vld [vmem:[%s2 + $0x80] sm:$0xff]
    %v527 = vld [vmem:[%s2 + $0x88] sm:$0xff]
    %v528 = vld [vmem:[%s2 + $0x90] sm:$0xff]
    %v529 = vld [vmem:[%s2 + $0x98] sm:$0xff]
    %v530 = vld [vmem:[%s2 + $0xa0] sm:$0xff]
    %v531 = vld [vmem:[%s2 + $0xa8] sm:$0xff]
    %v532 = vld [vmem:[%s2 + $0xb0] sm:$0xff]
    %v533 = vld [vmem:[%s2 + $0xb8] sm:$0xff]
    %v534 = vld [vmem:[%s2 + $0xc0] sm:$0xff]
    %v535 = vld [vmem:[%s2 + $0xc8] sm:$0xff]
    %v536 = vld [vmem:[%s2 + $0xd0] sm:$0xff]
    %v537 = vld [vmem:[%s2 + $0xd8] sm:$0xff]
    %v538 = vld [vmem:[%s2 + $0xe0] sm:$0xff]
    %v539 = vld [vmem:[%s2 + $0xe8] sm:$0xff]
    %v540 = vld [vmem:[%s2 + $0xf0] sm:$0xff]
    %v541 = vld [vmem:[%s2 + $0xf8] sm:$0xff]
    %v542 = vld [vmem:[%s2 + $0x100] sm:$0xff]
    %v543 = vld [vmem:[%s2 + $0x108] sm:$0xff]
    %v544 = vld [vmem:[%s2 + $0x110] sm:$0xff]
    %v545 = vld [vmem:[%s2 + $0x118] sm:$0xff]
    %v546 = vld [vmem:[%s2 + $0x120] sm:$0xff]
    %v547 = vld [vmem:[%s2 + $0x128] sm:$0xff]
    %v548 = vld [vmem:[%s2 + $0x130] sm:$0xff]
    %v549 = vld [vmem:[%s2 + $0x138] sm:$0xff]
    %v550 = vld [vmem:[%s2 + $0x140] sm:$0xff]
    %v551 = vld [vmem:[%s2 + $0x148] sm:$0xff]
    %v552 = vld [vmem:[%s2 + $0x150] sm:$0xff]
    %v553 = vld [vmem:[%s2 + $0x158] sm:$0xff]
    %v554 = vld [vmem:[%s2 + $0x160] sm:$0xff]
    %v555 = vld [vmem:[%s2 + $0x168] sm:$0xff]
    %v556 = vld [vmem:[%s2 + $0x170] sm:$0xff]
    %v557 = vld [vmem:[%s2 + $0x178] sm:$0xff]
    %v558 = vld [vmem:[%s2 + $0x180] sm:$0xff]
    %v559 = vld [vmem:[%s2 + $0x188] sm:$0xff]
    %v560 = vld [vmem:[%s2 + $0x190] sm:$0xff]
    %v561 = vld [vmem:[%s2 + $0x198] sm:$0xff]
    %v562 = vld [vmem:[%s2 + $0x1a0] sm:$0xff]
    %v563 = vld [vmem:[%s2 + $0x1a8] sm:$0xff]
    %v564 = vld [vmem:[%s2 + $0x1b0] sm:$0xff]
    %v565 = vld [vmem:[%s2 + $0x1b8] sm:$0xff]
    %v566 = vld [vmem:[%s2 + $0x1c0] sm:$0xff]
    %v567 = vld [vmem:[%s2 + $0x1c8] sm:$0xff]
    %v568 = vld [vmem:[%s2 + $0x1d0] sm:$0xff]
    %v569 = vld [vmem:[%s2 + $0x1d8] sm:$0xff]
    %v570 = vld [vmem:[%s2 + $0x1e0] sm:$0xff]
    %v571 = vld [vmem:[%s2 + $0x1e8] sm:$0xff]
    %v572 = vld [vmem:[%s2 + $0x1f0] sm:$0xff]
    %v573 = vld [vmem:[%s2 + $0x1f8] sm:$0xff]
    %v575 = vsel %vm133, %v510, 0
    %v578 = vsel %vm133, %v511, 0
    %v581 = vsel %vm133, %v512, 0
    %v584 = vsel %vm133, %v513, 0
    %v587 = vsel %vm133, %v514, 0
    %v590 = vsel %vm133, %v515, 0
    %v593 = vsel %vm133, %v516, 0
    %v596 = vsel %vm133, %v517, 0
    %v599 = vsel %vm133, %v518, 0
    %v602 = vsel %vm133, %v519, 0
    %v605 = vsel %vm133, %v520, 0
    %v608 = vsel %vm133, %v521, 0
    %v611 = vsel %vm133, %v522, 0
    %v614 = vsel %vm133, %v523, 0
    %v617 = vsel %vm133, %v524, 0
    %v620 = vsel %vm133, %v525, 0
    %v623 = vsel %vm133, %v526, 0
    %v626 = vsel %vm133, %v527, 0
    %v629 = vsel %vm133, %v528, 0
    %v632 = vsel %vm133, %v529, 0
    %v635 = vsel %vm133, %v530, 0
    %v638 = vsel %vm133, %v531, 0
    %v641 = vsel %vm133, %v532, 0
    %v644 = vsel %vm133, %v533, 0
    %v647 = vsel %vm133, %v534, 0
    %v650 = vsel %vm133, %v535, 0
    %v653 = vsel %vm133, %v536, 0
    %v656 = vsel %vm133, %v537, 0
    %v659 = vsel %vm133, %v538, 0
    %v662 = vsel %vm133, %v539, 0
    %v665 = vsel %vm133, %v540, 0
    %v668 = vsel %vm133, %v541, 0
    %v671 = vsel %vm133, %v542, 0
    %v674 = vsel %vm133, %v543, 0
    %v677 = vsel %vm133, %v544, 0
    %v680 = vsel %vm133, %v545, 0
    %v683 = vsel %vm133, %v546, 0
    %v686 = vsel %vm133, %v547, 0
    %v689 = vsel %vm133, %v548, 0
    %v692 = vsel %vm133, %v549, 0
    %v695 = vsel %vm133, %v550, 0
    %v698 = vsel %vm133, %v551, 0
    %v701 = vsel %vm133, %v552, 0
    %v704 = vsel %vm133, %v553, 0
    %v707 = vsel %vm133, %v554, 0
    %v710 = vsel %vm133, %v555, 0
    %v713 = vsel %vm133, %v556, 0
    %v716 = vsel %vm133, %v557, 0
    %v719 = vsel %vm133, %v558, 0
    %v722 = vsel %vm133, %v559, 0
    %v725 = vsel %vm133, %v560, 0
    %v728 = vsel %vm133, %v561, 0
    %v731 = vsel %vm133, %v562, 0
    %v734 = vsel %vm133, %v563, 0
    %v737 = vsel %vm133, %v564, 0
    %v740 = vsel %vm133, %v565, 0
    %v743 = vsel %vm133, %v566, 0
    %v746 = vsel %vm133, %v567, 0
    %v749 = vsel %vm133, %v568, 0
    %v752 = vsel %vm133, %v569, 0
    %v755 = vsel %vm133, %v570, 0
    %v758 = vsel %vm133, %v571, 0
    %v761 = vsel %vm133, %v572, 0
    %v764 = vsel %vm133, %v573, 0
    %766 = vmatprep.subr.mxu0 0.0
    %767 = vmatpush1.xpose.msra.mxu0 %v575
    %768 = vmatprep.subr.mxu0 0.0
    %769 = vmatpush1.xpose.msra.mxu0 %v578
    %770 = vmatprep.subr.mxu0 0.0
    %771 = vmatpush1.xpose.msra.mxu0 %v581
    %772 = vmatprep.subr.mxu0 0.0
    %773 = vmatpush1.xpose.msra.mxu0 %v584
    %774 = vmatprep.subr.mxu0 0.0
    %775 = vmatpush1.xpose.msra.mxu0 %v587
    %776 = vmatprep.subr.mxu0 0.0
    %777 = vmatpush1.xpose.msra.mxu0 %v590
    %778 = vmatprep.subr.mxu0 0.0
    %779 = vmatpush1.xpose.msra.mxu0 %v593
    %780 = vmatprep.subr.mxu0 0.0
    %781 = vmatpush1.xpose.msra.mxu0 %v596
    %782 = vmatprep.subr.mxu0 0.0
    %783 = vmatpush1.xpose.msra.mxu0 %v599
    %784 = vmatprep.subr.mxu0 0.0
    %785 = vmatpush1.xpose.msra.mxu0 %v602
    %786 = vmatprep.subr.mxu0 0.0
    %787 = vmatpush1.xpose.msra.mxu0 %v605
    %788 = vmatprep.subr.mxu0 0.0
    %789 = vmatpush1.xpose.msra.mxu0 %v608
    %790 = vmatprep.subr.mxu0 0.0
    %791 = vmatpush1.xpose.msra.mxu0 %v611
    %792 = vmatprep.subr.mxu0 0.0
    %793 = vmatpush1.xpose.msra.mxu0 %v614
    %794 = vmatprep.subr.mxu0 0.0
    %795 = vmatpush1.xpose.msra.mxu0 %v617
    %796 = vmatprep.subr.mxu0 0.0
    %797 = vmatpush1.xpose.msra.mxu0 %v620
    %798 = vmatprep.subr.mxu0 0.0
    %799 = vmatpush1.xpose.msra.mxu0 %v623
    %800 = vmatprep.subr.mxu0 0.0
    %801 = vmatpush1.xpose.msra.mxu0 %v626
    %802 = vmatprep.subr.mxu0 0.0
    %803 = vmatpush1.xpose.msra.mxu0 %v629
    %804 = vmatprep.subr.mxu0 0.0
    %805 = vmatpush1.xpose.msra.mxu0 %v632
    %806 = vmatprep.subr.mxu0 0.0
    %807 = vmatpush1.xpose.msra.mxu0 %v635
    %808 = vmatprep.subr.mxu0 0.0
    %809 = vmatpush1.xpose.msra.mxu0 %v638
    %810 = vmatprep.subr.mxu0 0.0
    %811 = vmatpush1.xpose.msra.mxu0 %v641
    %812 = vmatprep.subr.mxu0 0.0
    %813 = vmatpush1.xpose.msra.mxu0 %v644
    %814 = vmatprep.subr.mxu0 0.0
    %815 = vmatpush1.xpose.msra.mxu0 %v647
    %816 = vmatprep.subr.mxu0 0.0
    %817 = vmatpush1.xpose.msra.mxu0 %v650
    %818 = vmatprep.subr.mxu0 0.0
    %819 = vmatpush1.xpose.msra.mxu0 %v653
    %820 = vmatprep.subr.mxu0 0.0
    %821 = vmatpush1.xpose.msra.mxu0 %v656
    %822 = vmatprep.subr.mxu0 0.0
    %823 = vmatpush1.xpose.msra.mxu0 %v659
    %824 = vmatprep.subr.mxu0 0.0
    %825 = vmatpush1.xpose.msra.mxu0 %v662
    %826 = vmatprep.subr.mxu0 0.0
    %827 = vmatpush1.xpose.msra.mxu0 %v665
    %828 = vmatprep.subr.mxu0 0.0
    %829 = vmatpush1.xpose.msra.mxu0 %v668
    %830 = vmatprep.mubr.f32.mxu0 0.0
    %831 = vmatmul.mubr.f32.gmra.mrb[0].mxu0 %v135
    %v832 = vpop.f32.mrb[0].mxu0
    %v833 = vadd.f32 0.0, %v832
    %v834 = vpop.f32.mrb[0].mxu0
    %v835 = vadd.f32 0.0, %v834
    %836 = vmatprep.mubr.f32.mxu0 0.0
    %837 = vmatmul.mubr.f32.gmra.mrb[0].mxu0 %v138
    %v838 = vpop.f32.mrb[0].mxu0
    %v839 = vadd.f32 0.0, %v838
    %v840 = vpop.f32.mrb[0].mxu0
    %v841 = vadd.f32 0.0, %v840
    %842 = vdwg.mxu0
    %843 = vmatprep.subr.mxu0 0.0
    %844 = vmatpush1.xpose.msra.mxu0 %v671
    %845 = vmatprep.subr.mxu0 0.0
    %846 = vmatpush1.xpose.msra.mxu0 %v674
    %847 = vmatprep.subr.mxu0 0.0
    %848 = vmatpush1.xpose.msra.mxu0 %v677
    %849 = vmatprep.subr.mxu0 0.0
    %850 = vmatpush1.xpose.msra.mxu0 %v680
    %851 = vmatprep.subr.mxu0 0.0
    %852 = vmatpush1.xpose.msra.mxu0 %v683
    %853 = vmatprep.subr.mxu0 0.0
    %854 = vmatpush1.xpose.msra.mxu0 %v686
    %855 = vmatprep.subr.mxu0 0.0
    %856 = vmatpush1.xpose.msra.mxu0 %v689
    %857 = vmatprep.subr.mxu0 0.0
    %858 = vmatpush1.xpose.msra.mxu0 %v692
    %859 = vmatprep.subr.mxu0 0.0
    %860 = vmatpush1.xpose.msra.mxu0 %v695
    %861 = vmatprep.subr.mxu0 0.0
    %862 = vmatpush1.xpose.msra.mxu0 %v698
    %863 = vmatprep.subr.mxu0 0.0
    %864 = vmatpush1.xpose.msra.mxu0 %v701
    %865 = vmatprep.subr.mxu0 0.0
    %866 = vmatpush1.xpose.msra.mxu0 %v704
    %867 = vmatprep.subr.mxu0 0.0
    %868 = vmatpush1.xpose.msra.mxu0 %v707
    %869 = vmatprep.subr.mxu0 0.0
    %870 = vmatpush1.xpose.msra.mxu0 %v710
    %871 = vmatprep.subr.mxu0 0.0
    %872 = vmatpush1.xpose.msra.mxu0 %v713
    %873 = vmatprep.subr.mxu0 0.0
    %874 = vmatpush1.xpose.msra.mxu0 %v716
    %875 = vmatprep.subr.mxu0 0.0
    %876 = vmatpush1.xpose.msra.mxu0 %v719
    %877 = vmatprep.subr.mxu0 0.0
    %878 = vmatpush1.xpose.msra.mxu0 %v722
    %879 = vmatprep.subr.mxu0 0.0
    %880 = vmatpush1.xpose.msra.mxu0 %v725
    %881 = vmatprep.subr.mxu0 0.0
    %882 = vmatpush1.xpose.msra.mxu0 %v728
    %883 = vmatprep.subr.mxu0 0.0
    %884 = vmatpush1.xpose.msra.mxu0 %v731
    %885 = vmatprep.subr.mxu0 0.0
    %886 = vmatpush1.xpose.msra.mxu0 %v734
    %887 = vmatprep.subr.mxu0 0.0
    %888 = vmatpush1.xpose.msra.mxu0 %v737
    %889 = vmatprep.subr.mxu0 0.0
    %890 = vmatpush1.xpose.msra.mxu0 %v740
    %891 = vmatprep.subr.mxu0 0.0
    %892 = vmatpush1.xpose.msra.mxu0 %v743
    %893 = vmatprep.subr.mxu0 0.0
    %894 = vmatpush1.xpose.msra.mxu0 %v746
    %895 = vmatprep.subr.mxu0 0.0
    %896 = vmatpush1.xpose.msra.mxu0 %v749
    %897 = vmatprep.subr.mxu0 0.0
    %898 = vmatpush1.xpose.msra.mxu0 %v752
    %899 = vmatprep.subr.mxu0 0.0
    %900 = vmatpush1.xpose.msra.mxu0 %v755
    %901 = vmatprep.subr.mxu0 0.0
    %902 = vmatpush1.xpose.msra.mxu0 %v758
    %903 = vmatprep.subr.mxu0 0.0
    %904 = vmatpush1.xpose.msra.mxu0 %v761
    %905 = vmatprep.subr.mxu0 0.0
    %906 = vmatpush1.xpose.msra.mxu0 %v764
    %907 = vmatprep.mubr.f32.mxu0 0.0
    %908 = vmatmul.mubr.f32.gmra.mrb[0].mxu0 %v135
    %v909 = vpop.f32.mrb[0].mxu0
    %v910 = vadd.f32 0.0, %v909
    %v911 = vpop.f32.mrb[0].mxu0
    %v912 = vadd.f32 0.0, %v911
    %913 = vmatprep.mubr.f32.mxu0 0.0
    %914 = vmatmul.mubr.f32.gmra.mrb[0].mxu0 %v138
    %v915 = vpop.f32.mrb[0].mxu0
    %v916 = vadd.f32 0.0, %v915
    %v917 = vpop.f32.mrb[0].mxu0
    %v918 = vadd.f32 0.0, %v917
    %919 = vdwg.mxu0
    %v920 = vadd.f32 %v502, %v833
    %v921 = vadd.f32 %v503, %v835
    %v922 = vadd.f32 %v504, %v910
    %v923 = vadd.f32 %v505, %v912
    %v924 = vadd.f32 %v506, %v839
    %v925 = vadd.f32 %v507, %v841
    %v926 = vadd.f32 %v508, %v916
    %v927 = vadd.f32 %v509, %v918
    %928 = vst [vmem:[#allocation3] sm:$0xff] %v920
    %929 = vst [vmem:[#allocation3 + $0x8] sm:$0xff] %v921
    %930 = vst [vmem:[#allocation3 + $0x10] sm:$0xff] %v922
    %931 = vst [vmem:[#allocation3 + $0x18] sm:$0xff] %v923
    %932 = vst [vmem:[#allocation3 + $0x20] sm:$0xff] %v924
    %933 = vst [vmem:[#allocation3 + $0x28] sm:$0xff] %v925
    %934 = vst [vmem:[#allocation3 + $0x30] sm:$0xff] %v926
    %935 = vst [vmem:[#allocation3 + $0x38] sm:$0xff] %v927
    %v936 = vld [vmem:[#allocation4] sm:$0xff]
    %v937 = vld [vmem:[#allocation4 + $0x8] sm:$0xff]
    %v938 = vld [vmem:[#allocation4 + $0x10] sm:$0xff]
    %v939 = vld [vmem:[#allocation4 + $0x18] sm:$0xff]
    %v940 = vld [vmem:[#allocation4 + $0x20] sm:$0xff]
    %v941 = vld [vmem:[#allocation4 + $0x28] sm:$0xff]
    %v942 = vld [vmem:[#allocation4 + $0x30] sm:$0xff]
    %v943 = vld [vmem:[#allocation4 + $0x38] sm:$0xff]
    %v944 = vld [vmem:[%s3] sm:$0xff]
    %v945 = vld [vmem:[%s3 + $0x8] sm:$0xff]
    %v946 = vld [vmem:[%s3 + $0x10] sm:$0xff]
    %v947 = vld [vmem:[%s3 + $0x18] sm:$0xff]
    %v948 = vld [vmem:[%s3 + $0x20] sm:$0xff]
    %v949 = vld [vmem:[%s3 + $0x28] sm:$0xff]
    %v950 = vld [vmem:[%s3 + $0x30] sm:$0xff]
    %v951 = vld [vmem:[%s3 + $0x38] sm:$0xff]
    %v952 = vld [vmem:[%s3 + $0x40] sm:$0xff]
    %v953 = vld [vmem:[%s3 + $0x48] sm:$0xff]
    %v954 = vld [vmem:[%s3 + $0x50] sm:$0xff]
    %v955 = vld [vmem:[%s3 + $0x58] sm:$0xff]
    %v956 = vld [vmem:[%s3 + $0x60] sm:$0xff]
    %v957 = vld [vmem:[%s3 + $0x68] sm:$0xff]
    %v958 = vld [vmem:[%s3 + $0x70] sm:$0xff]
    %v959 = vld [vmem:[%s3 + $0x78] sm:$0xff]
    %v960 = vld [vmem:[%s3 + $0x80] sm:$0xff]
    %v961 = vld [vmem:[%s3 + $0x88] sm:$0xff]
    %v962 = vld [vmem:[%s3 + $0x90] sm:$0xff]
    %v963 = vld [vmem:[%s3 + $0x98] sm:$0xff]
    %v964 = vld [vmem:[%s3 + $0xa0] sm:$0xff]
    %v965 = vld [vmem:[%s3 + $0xa8] sm:$0xff]
    %v966 = vld [vmem:[%s3 + $0xb0] sm:$0xff]
    %v967 = vld [vmem:[%s3 + $0xb8] sm:$0xff]
    %v968 = vld [vmem:[%s3 + $0xc0] sm:$0xff]
    %v969 = vld [vmem:[%s3 + $0xc8] sm:$0xff]
    %v970 = vld [vmem:[%s3 + $0xd0] sm:$0xff]
    %v971 = vld [vmem:[%s3 + $0xd8] sm:$0xff]
    %v972 = vld [vmem:[%s3 + $0xe0] sm:$0xff]
    %v973 = vld [vmem:[%s3 + $0xe8] sm:$0xff]
    %v974 = vld [vmem:[%s3 + $0xf0] sm:$0xff]
    %v975 = vld [vmem:[%s3 + $0xf8] sm:$0xff]
    %v976 = vld [vmem:[%s3 + $0x100] sm:$0xff]
    %v977 = vld [vmem:[%s3 + $0x108] sm:$0xff]
    %v978 = vld [vmem:[%s3 + $0x110] sm:$0xff]
    %v979 = vld [vmem:[%s3 + $0x118] sm:$0xff]
    %v980 = vld [vmem:[%s3 + $0x120] sm:$0xff]
    %v981 = vld [vmem:[%s3 + $0x128] sm:$0xff]
    %v982 = vld [vmem:[%s3 + $0x130] sm:$0xff]
    %v983 = vld [vmem:[%s3 + $0x138] sm:$0xff]
    %v984 = vld [vmem:[%s3 + $0x140] sm:$0xff]
    %v985 = vld [vmem:[%s3 + $0x148] sm:$0xff]
    %v986 = vld [vmem:[%s3 + $0x150] sm:$0xff]
    %v987 = vld [vmem:[%s3 + $0x158] sm:$0xff]
    %v988 = vld [vmem:[%s3 + $0x160] sm:$0xff]
    %v989 = vld [vmem:[%s3 + $0x168] sm:$0xff]
    %v990 = vld [vmem:[%s3 + $0x170] sm:$0xff]
    %v991 = vld [vmem:[%s3 + $0x178] sm:$0xff]
    %v992 = vld [vmem:[%s3 + $0x180] sm:$0xff]
    %v993 = vld [vmem:[%s3 + $0x188] sm:$0xff]
    %v994 = vld [vmem:[%s3 + $0x190] sm:$0xff]
    %v995 = vld [vmem:[%s3 + $0x198] sm:$0xff]
    %v996 = vld [vmem:[%s3 + $0x1a0] sm:$0xff]
    %v997 = vld [vmem:[%s3 + $0x1a8] sm:$0xff]
    %v998 = vld [vmem:[%s3 + $0x1b0] sm:$0xff]
    %v999 = vld [vmem:[%s3 + $0x1b8] sm:$0xff]
    %v1000 = vld [vmem:[%s3 + $0x1c0] sm:$0xff]
    %v1001 = vld [vmem:[%s3 + $0x1c8] sm:$0xff]
    %v1002 = vld [vmem:[%s3 + $0x1d0] sm:$0xff]
    %v1003 = vld [vmem:[%s3 + $0x1d8] sm:$0xff]
    %v1004 = vld [vmem:[%s3 + $0x1e0] sm:$0xff]
    %v1005 = vld [vmem:[%s3 + $0x1e8] sm:$0xff]
    %v1006 = vld [vmem:[%s3 + $0x1f0] sm:$0xff]
    %v1007 = vld [vmem:[%s3 + $0x1f8] sm:$0xff]
    %v1009 = vsel %vm133, %v944, 0
    %v1012 = vsel %vm133, %v945, 0
    %v1015 = vsel %vm133, %v946, 0
    %v1018 = vsel %vm133, %v947, 0
    %v1021 = vsel %vm133, %v948, 0
    %v1024 = vsel %vm133, %v949, 0
    %v1027 = vsel %vm133, %v950, 0
    %v1030 = vsel %vm133, %v951, 0
    %v1033 = vsel %vm133, %v952, 0
    %v1036 = vsel %vm133, %v953, 0
    %v1039 = vsel %vm133, %v954, 0
    %v1042 = vsel %vm133, %v955, 0
    %v1045 = vsel %vm133, %v956, 0
    %v1048 = vsel %vm133, %v957, 0
    %v1051 = vsel %vm133, %v958, 0
    %v1054 = vsel %vm133, %v959, 0
    %v1057 = vsel %vm133, %v960, 0
    %v1060 = vsel %vm133, %v961, 0
    %v1063 = vsel %vm133, %v962, 0
    %v1066 = vsel %vm133, %v963, 0
    %v1069 = vsel %vm133, %v964, 0
    %v1072 = vsel %vm133, %v965, 0
    %v1075 = vsel %vm133, %v966, 0
    %v1078 = vsel %vm133, %v967, 0
    %v1081 = vsel %vm133, %v968, 0
    %v1084 = vsel %vm133, %v969, 0
    %v1087 = vsel %vm133, %v970, 0
    %v1090 = vsel %vm133, %v971, 0
    %v1093 = vsel %vm133, %v972, 0
    %v1096 = vsel %vm133, %v973, 0
    %v1099 = vsel %vm133, %v974, 0
    %v1102 = vsel %vm133, %v975, 0
    %v1105 = vsel %vm133, %v976, 0
    %v1108 = vsel %vm133, %v977, 0
    %v1111 = vsel %vm133, %v978, 0
    %v1114 = vsel %vm133, %v979, 0
    %v1117 = vsel %vm133, %v980, 0
    %v1120 = vsel %vm133, %v981, 0
    %v1123 = vsel %vm133, %v982, 0
    %v1126 = vsel %vm133, %v983, 0
    %v1129 = vsel %vm133, %v984, 0
    %v1132 = vsel %vm133, %v985, 0
    %v1135 = vsel %vm133, %v986, 0
    %v1138 = vsel %vm133, %v987, 0
    %v1141 = vsel %vm133, %v988, 0
    %v1144 = vsel %vm133, %v989, 0
    %v1147 = vsel %vm133, %v990, 0
    %v1150 = vsel %vm133, %v991, 0
    %v1153 = vsel %vm133, %v992, 0
    %v1156 = vsel %vm133, %v993, 0
    %v1159 = vsel %vm133, %v994, 0
    %v1162 = vsel %vm133, %v995, 0
    %v1165 = vsel %vm133, %v996, 0
    %v1168 = vsel %vm133, %v997, 0
    %v1171 = vsel %vm133, %v998, 0
    %v1174 = vsel %vm133, %v999, 0
    %v1177 = vsel %vm133, %v1000, 0
    %v1180 = vsel %vm133, %v1001, 0
    %v1183 = vsel %vm133, %v1002, 0
    %v1186 = vsel %vm133, %v1003, 0
    %v1189 = vsel %vm133, %v1004, 0
    %v1192 = vsel %vm133, %v1005, 0
    %v1195 = vsel %vm133, %v1006, 0
    %v1198 = vsel %vm133, %v1007, 0
    %1200 = vmatprep.subr.mxu0 0.0
    %1201 = vmatpush1.xpose.msra.mxu0 %v1009
    %1202 = vmatprep.subr.mxu0 0.0
    %1203 = vmatpush1.xpose.msra.mxu0 %v1012
    %1204 = vmatprep.subr.mxu0 0.0
    %1205 = vmatpush1.xpose.msra.mxu0 %v1015
    %1206 = vmatprep.subr.mxu0 0.0
    %1207 = vmatpush1.xpose.msra.mxu0 %v1018
    %1208 = vmatprep.subr.mxu0 0.0
    %1209 = vmatpush1.xpose.msra.mxu0 %v1021
    %1210 = vmatprep.subr.mxu0 0.0
    %1211 = vmatpush1.xpose.msra.mxu0 %v1024
    %1212 = vmatprep.subr.mxu0 0.0
    %1213 = vmatpush1.xpose.msra.mxu0 %v1027
    %1214 = vmatprep.subr.mxu0 0.0
    %1215 = vmatpush1.xpose.msra.mxu0 %v1030
    %1216 = vmatprep.subr.mxu0 0.0
    %1217 = vmatpush1.xpose.msra.mxu0 %v1033
    %1218 = vmatprep.subr.mxu0 0.0
    %1219 = vmatpush1.xpose.msra.mxu0 %v1036
    %1220 = vmatprep.subr.mxu0 0.0
    %1221 = vmatpush1.xpose.msra.mxu0 %v1039
    %1222 = vmatprep.subr.mxu0 0.0
    %1223 = vmatpush1.xpose.msra.mxu0 %v1042
    %1224 = vmatprep.subr.mxu0 0.0
    %1225 = vmatpush1.xpose.msra.mxu0 %v1045
    %1226 = vmatprep.subr.mxu0 0.0
    %1227 = vmatpush1.xpose.msra.mxu0 %v1048
    %1228 = vmatprep.subr.mxu0 0.0
    %1229 = vmatpush1.xpose.msra.mxu0 %v1051
    %1230 = vmatprep.subr.mxu0 0.0
    %1231 = vmatpush1.xpose.msra.mxu0 %v1054
    %1232 = vmatprep.subr.mxu0 0.0
    %1233 = vmatpush1.xpose.msra.mxu0 %v1057
    %1234 = vmatprep.subr.mxu0 0.0
    %1235 = vmatpush1.xpose.msra.mxu0 %v1060
    %1236 = vmatprep.subr.mxu0 0.0
    %1237 = vmatpush1.xpose.msra.mxu0 %v1063
    %1238 = vmatprep.subr.mxu0 0.0
    %1239 = vmatpush1.xpose.msra.mxu0 %v1066
    %1240 = vmatprep.subr.mxu0 0.0
    %1241 = vmatpush1.xpose.msra.mxu0 %v1069
    %1242 = vmatprep.subr.mxu0 0.0
    %1243 = vmatpush1.xpose.msra.mxu0 %v1072
    %1244 = vmatprep.subr.mxu0 0.0
    %1245 = vmatpush1.xpose.msra.mxu0 %v1075
    %1246 = vmatprep.subr.mxu0 0.0
    %1247 = vmatpush1.xpose.msra.mxu0 %v1078
    %1248 = vmatprep.subr.mxu0 0.0
    %1249 = vmatpush1.xpose.msra.mxu0 %v1081
    %1250 = vmatprep.subr.mxu0 0.0
    %1251 = vmatpush1.xpose.msra.mxu0 %v1084
    %1252 = vmatprep.subr.mxu0 0.0
    %1253 = vmatpush1.xpose.msra.mxu0 %v1087
    %1254 = vmatprep.subr.mxu0 0.0
    %1255 = vmatpush1.xpose.msra.mxu0 %v1090
    %1256 = vmatprep.subr.mxu0 0.0
    %1257 = vmatpush1.xpose.msra.mxu0 %v1093
    %1258 = vmatprep.subr.mxu0 0.0
    %1259 = vmatpush1.xpose.msra.mxu0 %v1096
    %1260 = vmatprep.subr.mxu0 0.0
    %1261 = vmatpush1.xpose.msra.mxu0 %v1099
    %1262 = vmatprep.subr.mxu0 0.0
    %1263 = vmatpush1.xpose.msra.mxu0 %v1102
    %1264 = vmatprep.mubr.f32.mxu0 0.0
    %1265 = vmatmul.mubr.f32.gmra.mrb[0].mxu0 %v135
    %v1266 = vpop.f32.mrb[0].mxu0
    %v1267 = vadd.f32 0.0, %v1266
    %v1268 = vpop.f32.mrb[0].mxu0
    %v1269 = vadd.f32 0.0, %v1268
    %1270 = vmatprep.mubr.f32.mxu0 0.0
    %1271 = vmatmul.mubr.f32.gmra.mrb[0].mxu0 %v138
    %v1272 = vpop.f32.mrb[0].mxu0
    %v1273 = vadd.f32 0.0, %v1272
    %v1274 = vpop.f32.mrb[0].mxu0
    %v1275 = vadd.f32 0.0, %v1274
    %1276 = vdwg.mxu0
    %1277 = vmatprep.subr.mxu0 0.0
    %1278 = vmatpush1.xpose.msra.mxu0 %v1105
    %1279 = vmatprep.subr.mxu0 0.0
    %1280 = vmatpush1.xpose.msra.mxu0 %v1108
    %1281 = vmatprep.subr.mxu0 0.0
    %1282 = vmatpush1.xpose.msra.mxu0 %v1111
    %1283 = vmatprep.subr.mxu0 0.0
    %1284 = vmatpush1.xpose.msra.mxu0 %v1114
    %1285 = vmatprep.subr.mxu0 0.0
    %1286 = vmatpush1.xpose.msra.mxu0 %v1117
    %1287 = vmatprep.subr.mxu0 0.0
    %1288 = vmatpush1.xpose.msra.mxu0 %v1120
    %1289 = vmatprep.subr.mxu0 0.0
    %1290 = vmatpush1.xpose.msra.mxu0 %v1123
    %1291 = vmatprep.subr.mxu0 0.0
    %1292 = vmatpush1.xpose.msra.mxu0 %v1126
    %1293 = vmatprep.subr.mxu0 0.0
    %1294 = vmatpush1.xpose.msra.mxu0 %v1129
    %1295 = vmatprep.subr.mxu0 0.0
    %1296 = vmatpush1.xpose.msra.mxu0 %v1132
    %1297 = vmatprep.subr.mxu0 0.0
    %1298 = vmatpush1.xpose.msra.mxu0 %v1135
    %1299 = vmatprep.subr.mxu0 0.0
    %1300 = vmatpush1.xpose.msra.mxu0 %v1138
    %1301 = vmatprep.subr.mxu0 0.0
    %1302 = vmatpush1.xpose.msra.mxu0 %v1141
    %1303 = vmatprep.subr.mxu0 0.0
    %1304 = vmatpush1.xpose.msra.mxu0 %v1144
    %1305 = vmatprep.subr.mxu0 0.0
    %1306 = vmatpush1.xpose.msra.mxu0 %v1147
    %1307 = vmatprep.subr.mxu0 0.0
    %1308 = vmatpush1.xpose.msra.mxu0 %v1150
    %1309 = vmatprep.subr.mxu0 0.0
    %1310 = vmatpush1.xpose.msra.mxu0 %v1153
    %1311 = vmatprep.subr.mxu0 0.0
    %1312 = vmatpush1.xpose.msra.mxu0 %v1156
    %1313 = vmatprep.subr.mxu0 0.0
    %1314 = vmatpush1.xpose.msra.mxu0 %v1159
    %1315 = vmatprep.subr.mxu0 0.0
    %1316 = vmatpush1.xpose.msra.mxu0 %v1162
    %1317 = vmatprep.subr.mxu0 0.0
    %1318 = vmatpush1.xpose.msra.mxu0 %v1165
    %1319 = vmatprep.subr.mxu0 0.0
    %1320 = vmatpush1.xpose.msra.mxu0 %v1168
    %1321 = vmatprep.subr.mxu0 0.0
    %1322 = vmatpush1.xpose.msra.mxu0 %v1171
    %1323 = vmatprep.subr.mxu0 0.0
    %1324 = vmatpush1.xpose.msra.mxu0 %v1174
    %1325 = vmatprep.subr.mxu0 0.0
    %1326 = vmatpush1.xpose.msra.mxu0 %v1177
    %1327 = vmatprep.subr.mxu0 0.0
    %1328 = vmatpush1.xpose.msra.mxu0 %v1180
    %1329 = vmatprep.subr.mxu0 0.0
    %1330 = vmatpush1.xpose.msra.mxu0 %v1183
    %1331 = vmatprep.subr.mxu0 0.0
    %1332 = vmatpush1.xpose.msra.mxu0 %v1186
    %1333 = vmatprep.subr.mxu0 0.0
    %1334 = vmatpush1.xpose.msra.mxu0 %v1189
    %1335 = vmatprep.subr.mxu0 0.0
    %1336 = vmatpush1.xpose.msra.mxu0 %v1192
    %1337 = vmatprep.subr.mxu0 0.0
    %1338 = vmatpush1.xpose.msra.mxu0 %v1195
    %1339 = vmatprep.subr.mxu0 0.0
    %1340 = vmatpush1.xpose.msra.mxu0 %v1198
    %1341 = vmatprep.mubr.f32.mxu0 0.0
    %1342 = vmatmul.mubr.f32.gmra.mrb[0].mxu0 %v135
    %v1343 = vpop.f32.mrb[0].mxu0
    %v1344 = vadd.f32 0.0, %v1343
    %v1345 = vpop.f32.mrb[0].mxu0
    %v1346 = vadd.f32 0.0, %v1345
    %1347 = vmatprep.mubr.f32.mxu0 0.0
    %1348 = vmatmul.mubr.f32.gmra.mrb[0].mxu0 %v138
    %v1349 = vpop.f32.mrb[0].mxu0
    %v1350 = vadd.f32 0.0, %v1349
    %v1351 = vpop.f32.mrb[0].mxu0
    %v1352 = vadd.f32 0.0, %v1351
    %1353 = vdwg.mxu0
    %v1354 = vadd.f32 %v936, %v1267
    %v1355 = vadd.f32 %v937, %v1269
    %v1356 = vadd.f32 %v938, %v1344
    %v1357 = vadd.f32 %v939, %v1346
    %v1358 = vadd.f32 %v940, %v1273
    %v1359 = vadd.f32 %v941, %v1275
    %v1360 = vadd.f32 %v942, %v1350
    %v1361 = vadd.f32 %v943, %v1352
    %1362 = vst [vmem:[#allocation4] sm:$0xff] %v1354
    %1363 = vst [vmem:[#allocation4 + $0x8] sm:$0xff] %v1355
    %1364 = vst [vmem:[#allocation4 + $0x10] sm:$0xff] %v1356
    %1365 = vst [vmem:[#allocation4 + $0x18] sm:$0xff] %v1357
    %1366 = vst [vmem:[#allocation4 + $0x20] sm:$0xff] %v1358
    %1367 = vst [vmem:[#allocation4 + $0x28] sm:$0xff] %v1359
    %1368 = vst [vmem:[#allocation4 + $0x30] sm:$0xff] %v1360
    %1369 = vst [vmem:[#allocation4 + $0x38] sm:$0xff] %v1361
    // Predicated region
    $region34: #{tpu_custom_call.1} parent=1 // pred_check
      %p1370 = pneg %p31
    $region35: #{tpu_custom_call.1} parent=1 // pred_check_branch
      %1372 = sbr.rel (%p1370) target = $region37
    $region36: #{tpu_custom_call.1} parent=1 // pred_region
      %v1373 = vld [vmem:[#allocation2] sm:$0xff]
      %v1374 = vld [vmem:[#allocation2 + $0x8] sm:$0xff]
      %v1375 = vld [vmem:[#allocation2 + $0x10] sm:$0xff]
      %v1376 = vld [vmem:[#allocation2 + $0x18] sm:$0xff]
      %v1377 = vld [vmem:[#allocation2 + $0x20] sm:$0xff]
      %v1378 = vld [vmem:[#allocation2 + $0x28] sm:$0xff]
      %v1379 = vld [vmem:[#allocation2 + $0x30] sm:$0xff]
      %v1380 = vld [vmem:[#allocation2 + $0x38] sm:$0xff]
      %v1381 = vld [vmem:[%s4] sm:$0xf]
      %v1383 = vlaneseq
      %v1384 = vshrl.u32 %v1383, 7
      %v1385 = vsub.s32 0, %v1384
      %v1386 = vrot.slane %v1381, %v1385
      %v1387 = vlaneseq
      %v1388 = vshrl.u32 %v1387, 7
      %v1389 = vsub.s32 1, %v1388
      %v1390 = vrot.slane %v1381, %v1389
      %v1391 = vlaneseq
      %v1392 = vshrl.u32 %v1391, 7
      %v1393 = vsub.s32 2, %v1392
      %v1394 = vrot.slane %v1381, %v1393
      %v1395 = vlaneseq
      %v1396 = vshrl.u32 %v1395, 7
      %v1397 = vsub.s32 3, %v1396
      %v1398 = vrot.slane %v1381, %v1397
      %v1403 = vadd.f32 %v1373, %v1386
      %v1404 = vadd.f32 %v1374, %v1390
      %v1405 = vadd.f32 %v1375, %v1394
      %v1406 = vadd.f32 %v1376, %v1398
      %v1407 = vadd.f32 %v1377, %v1386
      %v1408 = vadd.f32 %v1378, %v1390
      %v1409 = vadd.f32 %v1379, %v1394
      %v1410 = vadd.f32 %v1380, %v1398
      %1411 = vst [vmem:[#allocation5] sm:$0xff] %v1403
      %1412 = vst [vmem:[#allocation5 + $0x8] sm:$0xff] %v1404
      %1413 = vst [vmem:[#allocation5 + $0x10] sm:$0xff] %v1405
      %1414 = vst [vmem:[#allocation5 + $0x18] sm:$0xff] %v1406
      %1415 = vst [vmem:[#allocation5 + $0x20] sm:$0xff] %v1407
      %1416 = vst [vmem:[#allocation5 + $0x28] sm:$0xff] %v1408
      %1417 = vst [vmem:[#allocation5 + $0x30] sm:$0xff] %v1409
      %1418 = vst [vmem:[#allocation5 + $0x38] sm:$0xff] %v1410
      %v1419 = vld [vmem:[#allocation3] sm:$0xff]
      %v1420 = vld [vmem:[#allocation3 + $0x8] sm:$0xff]
      %v1421 = vld [vmem:[#allocation3 + $0x10] sm:$0xff]
      %v1422 = vld [vmem:[#allocation3 + $0x18] sm:$0xff]
      %v1423 = vld [vmem:[#allocation3 + $0x20] sm:$0xff]
      %v1424 = vld [vmem:[#allocation3 + $0x28] sm:$0xff]
      %v1425 = vld [vmem:[#allocation3 + $0x30] sm:$0xff]
      %v1426 = vld [vmem:[#allocation3 + $0x38] sm:$0xff]
      %v1427 = vld [vmem:[%s5] sm:$0xf]
      %v1429 = vlaneseq
      %v1430 = vshrl.u32 %v1429, 7
      %v1431 = vsub.s32 0, %v1430
      %v1432 = vrot.slane %v1427, %v1431
      %v1433 = vlaneseq
      %v1434 = vshrl.u32 %v1433, 7
      %v1435 = vsub.s32 1, %v1434
      %v1436 = vrot.slane %v1427, %v1435
      %v1437 = vlaneseq
      %v1438 = vshrl.u32 %v1437, 7
      %v1439 = vsub.s32 2, %v1438
      %v1440 = vrot.slane %v1427, %v1439
      %v1441 = vlaneseq
      %v1442 = vshrl.u32 %v1441, 7
      %v1443 = vsub.s32 3, %v1442
      %v1444 = vrot.slane %v1427, %v1443
      %v1449 = vadd.f32 %v1419, %v1432
      %v1450 = vadd.f32 %v1420, %v1436
      %v1451 = vadd.f32 %v1421, %v1440
      %v1452 = vadd.f32 %v1422, %v1444
      %v1453 = vadd.f32 %v1423, %v1432
      %v1454 = vadd.f32 %v1424, %v1436
      %v1455 = vadd.f32 %v1425, %v1440
      %v1456 = vadd.f32 %v1426, %v1444
      %1457 = vst [vmem:[#allocation7] sm:$0xff] %v1449
      %1458 = vst [vmem:[#allocation7 + $0x8] sm:$0xff] %v1450
      %1459 = vst [vmem:[#allocation7 + $0x10] sm:$0xff] %v1451
      %1460 = vst [vmem:[#allocation7 + $0x18] sm:$0xff] %v1452
      %1461 = vst [vmem:[#allocation7 + $0x20] sm:$0xff] %v1453
      %1462 = vst [vmem:[#allocation7 + $0x28] sm:$0xff] %v1454
      %1463 = vst [vmem:[#allocation7 + $0x30] sm:$0xff] %v1455
      %1464 = vst [vmem:[#allocation7 + $0x38] sm:$0xff] %v1456
      %v1465 = vld [vmem:[#allocation4] sm:$0xff]
      %v1466 = vld [vmem:[#allocation4 + $0x8] sm:$0xff]
      %v1467 = vld [vmem:[#allocation4 + $0x10] sm:$0xff]
      %v1468 = vld [vmem:[#allocation4 + $0x18] sm:$0xff]
      %v1469 = vld [vmem:[#allocation4 + $0x20] sm:$0xff]
      %v1470 = vld [vmem:[#allocation4 + $0x28] sm:$0xff]
      %v1471 = vld [vmem:[#allocation4 + $0x30] sm:$0xff]
      %v1472 = vld [vmem:[#allocation4 + $0x38] sm:$0xff]
      %v1473 = vld [vmem:[%s6] sm:$0xf]
      %v1475 = vlaneseq
      %v1476 = vshrl.u32 %v1475, 7
      %v1477 = vsub.s32 0, %v1476
      %v1478 = vrot.slane %v1473, %v1477
      %v1479 = vlaneseq
      %v1480 = vshrl.u32 %v1479, 7
      %v1481 = vsub.s32 1, %v1480
      %v1482 = vrot.slane %v1473, %v1481
      %v1483 = vlaneseq
      %v1484 = vshrl.u32 %v1483, 7
      %v1485 = vsub.s32 2, %v1484
      %v1486 = vrot.slane %v1473, %v1485
      %v1487 = vlaneseq
      %v1488 = vshrl.u32 %v1487, 7
      %v1489 = vsub.s32 3, %v1488
      %v1490 = vrot.slane %v1473, %v1489
      %v1495 = vadd.f32 %v1465, %v1478
      %v1496 = vadd.f32 %v1466, %v1482
      %v1497 = vadd.f32 %v1467, %v1486
      %v1498 = vadd.f32 %v1468, %v1490
      %v1499 = vadd.f32 %v1469, %v1478
      %v1500 = vadd.f32 %v1470, %v1482
      %v1501 = vadd.f32 %v1471, %v1486
      %v1502 = vadd.f32 %v1472, %v1490
      %1503 = vst [vmem:[#allocation9] sm:$0xff] %v1495
      %1504 = vst [vmem:[#allocation9 + $0x8] sm:$0xff] %v1496
      %1505 = vst [vmem:[#allocation9 + $0x10] sm:$0xff] %v1497
      %1506 = vst [vmem:[#allocation9 + $0x18] sm:$0xff] %v1498
      %1507 = vst [vmem:[#allocation9 + $0x20] sm:$0xff] %v1499
      %1508 = vst [vmem:[#allocation9 + $0x28] sm:$0xff] %v1500
      %1509 = vst [vmem:[#allocation9 + $0x30] sm:$0xff] %v1501
      %1510 = vst [vmem:[#allocation9 + $0x38] sm:$0xff] %v1502
    $region37: #{tpu_custom_call.1} parent=1 // pred_fallthru
      _
    // Predicated region
    $region38: #{tpu_custom_call.1} parent=1 // pred_check
      _
    $region39: #{tpu_custom_call.1} parent=1 // pred_check_branch
      %1512 = sbr.rel (0) target = $region41
    $region40: #{tpu_custom_call.1} parent=1 // pred_region
      %s1514 = ssub.s32 1024, 1024
      %1515 = vsyncadd [#allocation6], %s1514
      %s1516 = sshll.u32 [#allocation5], 4
      %s1517 = int_to_ptr.vmem [resolvable:$true] %s1516
      %1522 = dma.vmem_to_hbm [thread:$0]  %s1517, 1024, %s7, [#allocation6], 512, 512, 32
    $region41: #{tpu_custom_call.1} parent=1 // pred_fallthru
      _
    // Predicated region
    $region42: #{tpu_custom_call.1} parent=1 // pred_check
      _
    $region43: #{tpu_custom_call.1} parent=1 // pred_check_branch
      %1524 = sbr.rel (0) target = $region45
    $region44: #{tpu_custom_call.1} parent=1 // pred_region
      %s1526 = ssub.s32 1024, 1024
      %1527 = vsyncadd [#allocation8], %s1526
      %s1528 = sshll.u32 [#allocation7], 4
      %s1529 = int_to_ptr.vmem [resolvable:$true] %s1528
      %1534 = dma.vmem_to_hbm [thread:$0]  %s1529, 1024, %s8, [#allocation8], 512, 512, 32
    $region45: #{tpu_custom_call.1} parent=1 // pred_fallthru
      _
    // Predicated region
    $region46: #{tpu_custom_call.1} parent=1 // pred_check
      _
    $region47: #{tpu_custom_call.1} parent=1 // pred_check_branch
      %1536 = sbr.rel (0) target = $region49
    $region48: #{tpu_custom_call.1} parent=1 // pred_region
      %s1538 = ssub.s32 1024, 1024
      %1539 = vsyncadd [#allocation8], %s1538
      %s1540 = sshll.u32 [#allocation9], 4
      %s1541 = int_to_ptr.vmem [resolvable:$true] %s1540
      %1546 = dma.vmem_to_hbm [thread:$0]  %s1541, 1024, %s9, [#allocation8], 512, 512, 32
    $region49: #{tpu_custom_call.1} parent=1 // pred_fallthru
      _
    // Predicated region
    $region50: #{tpu_custom_call.1} parent=1 // pred_check
      _
    $region51: #{tpu_custom_call.1} parent=1 // pred_check_branch
      %1548 = sbr.rel (0) target = $region53
    $region52: #{tpu_custom_call.1} parent=1 // pred_region
      %1549 = dma.done [#allocation6], 1024
    $region53: #{tpu_custom_call.1} parent=1 // pred_fallthru
      _
    // Predicated region
    $region54: #{tpu_custom_call.1} parent=1 // pred_check
      _
    $region55: #{tpu_custom_call.1} parent=1 // pred_check_branch
      %1551 = sbr.rel (0) target = $region57
    $region56: #{tpu_custom_call.1} parent=1 // pred_region
      %1552 = dma.done [#allocation8], 1024
    $region57: #{tpu_custom_call.1} parent=1 // pred_fallthru
      _
    // Predicated region
    $region58: #{tpu_custom_call.1} parent=1 // pred_check
      _
    $region59: #{tpu_custom_call.1} parent=1 // pred_check_branch
      %1554 = sbr.rel (0) target = $region61
    $region60: #{tpu_custom_call.1} parent=1 // pred_region
      %1555 = dma.done [#allocation8], 1024
    $region61: #{tpu_custom_call.1} parent=1 // pred_fallthru
      _
    %1556 = vsyncpa [#allocation6], 1
    %1557 = vsyncpa [#allocation8], 1

</llo_original>
